<compile_context>
chip_gen: v5e
topology: v5e:2x2
jax: 0.10.0
libtpu: 0.0.40
codegen_flags: <defaults>
</compile_context>

<pallas_src>
import functools

import jax
import jax.numpy as jnp
from jax import lax
from jax.experimental import pallas as pl
from jax.experimental.pallas import tpu as pltpu

# Matmul-operand dtype.  Set to jnp.bfloat16 on v6e/v7x for ~2x MXU throughput
# (accumulation stays f32 via preferred_element_type; gate/state math stays
# f32).  float32 keeps numerics closest to the f32 PyTorch reference.
MATMUL_DTYPE = jnp.float32


# ----------------------------------------------------------------------------
# Fused decoder-step kernel (one grid step == one decode step)
# ----------------------------------------------------------------------------
def _make_decoder_kernel(N, T, C, H, V):
    f32 = jnp.float32
    G = 4 * H

    def kernel(tf_ref,                                    # SMEM scalar prefetch
               feat_ref, amask_ref, gt_ref,               # inputs
               wih1_ref, whh1_ref, b1_ref,
               wih2_ref, whh2_ref, b2_ref,
               wih3_ref, whh3_ref, b3_ref,
               emb_ref, embT_ref, fcw_ref, fcb_ref, sb_ref,
               logits_ref, attn_ref,                      # outputs (per step)
               h_ref, c_ref, ctx_ref, prev_ref):          # persistent scratch
        t = pl.program_id(0)

        @pl.when(t == 0)
        def _():
            h_ref[...] = jnp.zeros_like(h_ref)
            c_ref[...] = jnp.zeros_like(c_ref)
            ctx_ref[...] = jnp.zeros_like(ctx_ref)
            prev_ref[...] = jnp.zeros_like(prev_ref)

        # ---- input token: teacher forcing vs. greedy argmax feedback --------
        vid = lax.broadcasted_iota(jnp.int32, (N, V), 1)
        prev = prev_ref[...]
        pmax = jnp.max(prev, axis=-1, keepdims=True)
        first = jnp.min(jnp.where(prev == pmax, vid, V), axis=-1, keepdims=True)
        greedy_oh = (vid == first).astype(f32)                      # one-hot(argmax)
        x_oh = jnp.where(tf_ref[t] > 0, gt_ref[0], greedy_oh)       # (N, V)

        emb = jnp.dot(x_oh.astype(MATMUL_DTYPE),
                      emb_ref[...].astype(MATMUL_DTYPE),
                      preferred_element_type=f32)                   # (N, H)

        # ---- three stacked LSTM cells (full-width act + lane-mask select) ---
        lane = lax.broadcasted_iota(jnp.int32, (N, G), 1)
        g_mask = (lane >= 2 * H) & (lane < 3 * H)                   # tanh lanes

        def cell(x, idx, wih_ref, whh_ref, b_ref):
            h = h_ref[idx]
            c = c_ref[idx]
            g = (jnp.dot(x.astype(MATMUL_DTYPE), wih_ref[...].astype(MATMUL_DTYPE),
                         preferred_element_type=f32)
                 + jnp.dot(h.astype(MATMUL_DTYPE), whh_ref[...].astype(MATMUL_DTYPE),
                           preferred_element_type=f32)
                 + b_ref[...])
            act = jnp.where(g_mask, jnp.tanh(g), jax.nn.sigmoid(g))
            i_g = act[:, 0 * H:1 * H]
            f_g = act[:, 1 * H:2 * H]
            g_g = act[:, 2 * H:3 * H]
            o_g = act[:, 3 * H:4 * H]
            c_new = f_g * c + i_g * g_g
            h_new = o_g * jnp.tanh(c_new)
            h_ref[idx] = h_new
            c_ref[idx] = c_new
            return h_new

        x1 = jnp.concatenate([emb, ctx_ref[...]], axis=1)           # (N, H+C)
        h1 = cell(x1, 0, wih1_ref, whh1_ref, b1_ref)
        h2 = cell(h1, 1, wih2_ref, whh2_ref, b2_ref)
        h3 = cell(h2, 2, wih3_ref, whh3_ref, b3_ref)

        # ---- length-masked dot-product attention over listener features -----
        feat = feat_ref[...]                                        # (N, T, C)
        q = h3[:, None, :]                                          # (N, 1, H)
        e = jnp.einsum('nqh,nth->nqt', q.astype(MATMUL_DTYPE),
                       feat.astype(MATMUL_DTYPE),
                       preferred_element_type=f32)[:, 0, :]         # (N, T)
        e = e + amask_ref[...]                                      # -1e9 at padding
        e = e - jnp.max(e, axis=-1, keepdims=True)
        p = jnp.exp(e)
        attn = p / jnp.sum(p, axis=-1, keepdims=True)               # (N, T)
        ctx = jnp.einsum('nqt,ntc->nqc', attn[:, None, :].astype(MATMUL_DTYPE),
                         feat.astype(MATMUL_DTYPE),
                         preferred_element_type=f32)[:, 0, :]       # (N, C)
        ctx_ref[...] = ctx

        # ---- output head: fc -> ReLU -> scoring (weight tied to embedding) --
        cat = jnp.concatenate([h3, ctx], axis=1)                    # (N, H+C)
        fc = jnp.maximum(
            jnp.dot(cat.astype(MATMUL_DTYPE), fcw_ref[...].astype(MATMUL_DTYPE),
                    preferred_element_type=f32) + fcb_ref[...], 0.0)
        logits = jnp.dot(fc.astype(MATMUL_DTYPE), embT_ref[...].astype(MATMUL_DTYPE),
                         preferred_element_type=f32) + sb_ref[...]  # (N, V)

        prev_ref[...] = logits
        logits_ref[0] = logits
        attn_ref[0] = attn

    return kernel


# ----------------------------------------------------------------------------
# Wrapper
# ----------------------------------------------------------------------------
@functools.partial(jax.jit, static_argnames=("max_iters",))
def _decode_core(feat, att_mask, gt_onehot, tf_mask, params, *, max_iters):
    N, T, C = feat.shape
    V, H = params["emb"].shape
    embT = jnp.transpose(params["emb"])                             # (H, V) tied scoring weight

    kernel = _make_decoder_kernel(N, T, C, H, V)

    def resident(shape):
        nd = len(shape)
        return pl.BlockSpec(shape, lambda t, tf, _nd=nd: (0,) * _nd)

    grid_spec = pltpu.PrefetchScalarGridSpec(
        num_scalar_prefetch=1,
        grid=(max_iters,),
        in_specs=[
            resident((N, T, C)),                                     # listener features
            resident((N, T)),                                        # additive attention mask
            pl.BlockSpec((1, N, V), lambda t, tf: (t, 0, 0)),        # teacher inputs (one-hot)
            resident(params["wih1"].shape), resident(params["whh1"].shape), resident(params["b1"].shape),
            resident(params["wih2"].shape), resident(params["whh2"].shape), resident(params["b2"].shape),
            resident(params["wih3"].shape), resident(params["whh3"].shape), resident(params["b3"].shape),
            resident((V, H)),                                        # embedding E
            resident((H, V)),                                        # E^T (tied scoring weight)
            resident(params["fcw"].shape), resident(params["fcb"].shape), resident(params["sb"].shape),
        ],
        out_specs=(pl.BlockSpec((1, N, V), lambda t, tf: (t, 0, 0)),
                   pl.BlockSpec((1, N, T), lambda t, tf: (t, 0, 0))),
        scratch_shapes=[
            pltpu.VMEM((3, N, H), jnp.float32),                      # h for lstm1..3
            pltpu.VMEM((3, N, H), jnp.float32),                      # c for lstm1..3
            pltpu.VMEM((N, C), jnp.float32),                         # attention context
            pltpu.VMEM((N, V), jnp.float32),                         # previous logits
        ],
    )

    logits_tm, attn_tm = pl.pallas_call(
        kernel,
        out_shape=(jax.ShapeDtypeStruct((max_iters, N, V), jnp.float32),
                   jax.ShapeDtypeStruct((max_iters, N, T), jnp.float32)),
        grid_spec=grid_spec,
        compiler_params=pltpu.CompilerParams(dimension_semantics=("arbitrary",)),
    )(tf_mask, feat, att_mask, gt_onehot,
      params["wih1"], params["whh1"], params["b1"],
      params["wih2"], params["whh2"], params["b2"],
      params["wih3"], params["whh3"], params["b3"],
      params["emb"], embT, params["fcw"], params["fcb"], params["sb"])
    return logits_tm, attn_tm


def decoder_forward(listener_feature, seq_sizes, max_iters, params,
                    ground_truth=None, teacher_force_rate=0.9, rng=None, sos_id=0):
    """Returns (logits (N, max_iters, V), attention weights (N, max_iters, T))."""
    N, T, C = listener_feature.shape
    V, H = params["emb"].shape

    if ground_truth is None:
        gt_tokens = jnp.full((N, max_iters), sos_id, jnp.int32)
        tf_mask = jnp.zeros((max_iters,), jnp.int32).at[0].set(1)
    else:
        gt_tokens = jnp.asarray(ground_truth, jnp.int32)
        if rng is None:
            rng = jax.random.PRNGKey(0)
        tf = jax.random.uniform(rng, (max_iters,)) < teacher_force_rate
        tf_mask = tf.astype(jnp.int32).at[0].set(1)                  # step 0 always <sos>/gt

    pos = jnp.arange(T)[None, :]
    att_mask = jnp.where(pos < jnp.asarray(seq_sizes)[:, None], 0.0, -1e9).astype(jnp.float32)
    gt_onehot = jax.nn.one_hot(gt_tokens.T, V, dtype=jnp.float32)    # (max_iters, N, V)

    logits_tm, attn_tm = _decode_core(listener_feature, att_mask, gt_onehot,
                                      tf_mask, params, max_iters=max_iters)
    return jnp.transpose(logits_tm, (1, 0, 2)), jnp.transpose(attn_tm, (1, 0, 2))


# ----------------------------------------------------------------------------
# Parameter init (PyTorch-style), stored in the fused kernel layout
# ----------------------------------------------------------------------------
def init_params(key, vocab_size, hidden_dim, context_dim):
    H, C, V = hidden_dim, context_dim, vocab_size
    params = {}
    key, ke = jax.random.split(key)
    params["emb"] = jax.random.normal(ke, (V, H), jnp.float32)       # nn.Embedding default N(0,1)

    def lstm(key, din, h):
        bound = 1.0 / float(h) ** 0.5
        key, k1, k2, k3, k4 = jax.random.split(key, 5)
        wih = jax.random.uniform(k1, (din, 4 * h), jnp.float32, -bound, bound)
        whh = jax.random.uniform(k2, (h, 4 * h), jnp.float32, -bound, bound)
        b = (jax.random.uniform(k3, (1, 4 * h), jnp.float32, -bound, bound)
             + jax.random.uniform(k4, (1, 4 * h), jnp.float32, -bound, bound))
        return key, wih, whh, b

    key, params["wih1"], params["whh1"], params["b1"] = lstm(key, H + C, H)
    key, params["wih2"], params["whh2"], params["b2"] = lstm(key, H, H)
    key, params["wih3"], params["whh3"], params["b3"] = lstm(key, H, H)

    fb = 1.0 / float(H + C) ** 0.5
    key, k1, k2, k3 = jax.random.split(key, 4)
    params["fcw"] = jax.random.uniform(k1, (H + C, H), jnp.float32, -fb, fb)
    params["fcb"] = jax.random.uniform(k2, (1, H), jnp.float32, -fb, fb)
    sbnd = 1.0 / float(H) ** 0.5
    params["sb"] = jax.random.uniform(k3, (1, V), jnp.float32, -sbnd, sbnd)  # scoring bias
    return params


# ----------------------------------------------------------------------------
# Pure-JAX reference (mirrors the PyTorch formulation) for verification
# ----------------------------------------------------------------------------
def _reference_decoder(feat, seq_sizes, gt_tokens, tf_mask, params, max_iters):
    HI = lax.Precision.HIGHEST
    N, T, C = feat.shape
    V, H = params["emb"].shape
    emb = params["emb"]
    valid = jnp.arange(T)[None, :] < jnp.asarray(seq_sizes)[:, None]

    def cell(x, h, c, wih, whh, b):
        g = jnp.dot(x, wih, precision=HI) + jnp.dot(h, whh, precision=HI) + b
        i = jax.nn.sigmoid(g[:, :H]); f = jax.nn.sigmoid(g[:, H:2 * H])
        gg = jnp.tanh(g[:, 2 * H:3 * H]); o = jax.nn.sigmoid(g[:, 3 * H:])
        c = f * c + i * gg
        return o * jnp.tanh(c), c

    hs = [jnp.zeros((N, H), jnp.float32) for _ in range(3)]
    cs = [jnp.zeros((N, H), jnp.float32) for _ in range(3)]
    ctx = jnp.zeros((N, C), jnp.float32)
    prev = jnp.zeros((N, V), jnp.float32)
    logits_all, attn_all = [], []
    for t in range(max_iters):
        tok = gt_tokens[:, t] if int(tf_mask[t]) > 0 else jnp.argmax(prev, axis=-1)
        x = jnp.concatenate([emb[tok], ctx], axis=1)
        hs[0], cs[0] = cell(x, hs[0], cs[0], params["wih1"], params["whh1"], params["b1"])
        hs[1], cs[1] = cell(hs[0], hs[1], cs[1], params["wih2"], params["whh2"], params["b2"])
        hs[2], cs[2] = cell(hs[1], hs[2], cs[2], params["wih3"], params["whh3"], params["b3"])
        e = jnp.einsum('nh,nth->nt', hs[2], feat, precision=HI)
        e = jnp.where(valid, e, -1e9)
        a = jax.nn.softmax(e, axis=-1)
        ctx = jnp.einsum('nt,ntc->nc', a, feat, precision=HI)
        fc = jax.nn.relu(jnp.dot(jnp.concatenate([hs[2], ctx], axis=1),
                                 params["fcw"], precision=HI) + params["fcb"])
        logits = jnp.dot(fc, emb.T, precision=HI) + params["sb"]
        prev = logits
        logits_all.append(logits)
        attn_all.append(a)
    return jnp.stack(logits_all, axis=1), jnp.stack(attn_all, axis=1)


# ----------------------------------------------------------------------------
if __name__ == "__main__":
    vocab_size = 33
    hidden = 32           # decoder_hidden_dim
    context_dim = 32      # == hidden (dot-product attention)
    batch = 2
    enc_T = 16            # listener timesteps
    max_iters = 8

    root = jax.random.PRNGKey(0)
    k_feat, k_par, k_gt = jax.random.split(root, 3)

    listener_feature = jax.random.normal(k_feat, (batch, enc_T, context_dim), jnp.float32)
    seq_sizes = [enc_T, enc_T - 4]
    ground_truth = jax.random.randint(k_gt, (batch, max_iters), 0, vocab_size)
    params = init_params(k_par, vocab_size, hidden, context_dim)

    # Teacher-forced run (rate=1.0 -> deterministic), verified against reference.
    logits, attn = decoder_forward(listener_feature, seq_sizes, max_iters, params,
                                   ground_truth=ground_truth, teacher_force_rate=1.0,
                                   rng=jax.random.PRNGKey(1))
    logits = jax.block_until_ready(logits)
    attn = jax.block_until_ready(attn)
    assert logits.shape == (batch, max_iters, vocab_size), logits.shape
    assert attn.shape == (batch, max_iters, enc_T), attn.shape
    assert bool(jnp.all(jnp.isfinite(logits)))

    tf_mask = jnp.ones((max_iters,), jnp.int32)
    ref_logits, ref_attn = _reference_decoder(listener_feature, seq_sizes,
                                              ground_truth, tf_mask, params, max_iters)
    # Loose tolerance only to absorb MXU f32 precision-mode differences.
    assert bool(jnp.allclose(logits, ref_logits, atol=5e-2, rtol=5e-2))
    assert bool(jnp.allclose(attn, ref_attn, atol=5e-2, rtol=5e-2))

    # Greedy decode path (no ground truth): in-kernel argmax feedback.
    g_logits, g_attn = decoder_forward(listener_feature, seq_sizes, max_iters, params)
    g_logits = jax.block_until_ready(g_logits)
    assert g_logits.shape == (batch, max_iters, vocab_size)
    assert bool(jnp.all(jnp.isfinite(g_logits)))

    print("KERNEL_OK")
</pallas_src>

<mosaic_0001>
module attributes {stable_mosaic.version = 11 : i64} {
  func.func @kernel(%arg0: i32, %arg1: memref<8xi32, #tpu.memory_space<smem>>, %arg2: memref<2x16x32xf32, #tpu.memory_space<vmem>>, %arg3: memref<2x16xf32, #tpu.memory_space<vmem>>, %arg4: memref<1x2x33xf32, #tpu.memory_space<vmem>>, %arg5: memref<64x128xf32, #tpu.memory_space<vmem>>, %arg6: memref<32x128xf32, #tpu.memory_space<vmem>>, %arg7: memref<1x128xf32, #tpu.memory_space<vmem>>, %arg8: memref<32x128xf32, #tpu.memory_space<vmem>>, %arg9: memref<32x128xf32, #tpu.memory_space<vmem>>, %arg10: memref<1x128xf32, #tpu.memory_space<vmem>>, %arg11: memref<32x128xf32, #tpu.memory_space<vmem>>, %arg12: memref<32x128xf32, #tpu.memory_space<vmem>>, %arg13: memref<1x128xf32, #tpu.memory_space<vmem>>, %arg14: memref<33x32xf32, #tpu.memory_space<vmem>>, %arg15: memref<32x33xf32, #tpu.memory_space<vmem>>, %arg16: memref<64x32xf32, #tpu.memory_space<vmem>>, %arg17: memref<1x32xf32, #tpu.memory_space<vmem>>, %arg18: memref<1x33xf32, #tpu.memory_space<vmem>>, %arg19: memref<1x2x33xf32, #tpu.memory_space<vmem>>, %arg20: memref<1x2x16xf32, #tpu.memory_space<vmem>>, %arg21: memref<3x2x32xf32, #tpu.memory_space<vmem>>, %arg22: memref<3x2x32xf32, #tpu.memory_space<vmem>>, %arg23: memref<2x32xf32, #tpu.memory_space<vmem>>, %arg24: memref<2x33xf32, #tpu.memory_space<vmem>>) attributes {dimension_semantics = [#tpu.dimension_semantics<arbitrary>], iteration_bounds = array<i64: 8>, scalar_prefetch = 1 : i64, scratch_operands = 4 : i64, tpu.core_type = #tpu.core_type<tc>, window_params = [{pipeline_mode = #tpu.pipeline_mode<synchronous>, transform_indices = @transform_0, window_bounds = array<i64: 2, 16, 32>}, {pipeline_mode = #tpu.pipeline_mode<synchronous>, transform_indices = @transform_1, window_bounds = array<i64: 2, 16>}, {transform_indices = @transform_2, window_bounds = array<i64: 1, 2, 33>}, {pipeline_mode = #tpu.pipeline_mode<synchronous>, transform_indices = @transform_3, window_bounds = array<i64: 64, 128>}, {pipeline_mode = #tpu.pipeline_mode<synchronous>, transform_indices = @transform_4, window_bounds = array<i64: 32, 128>}, {pipeline_mode = #tpu.pipeline_mode<synchronous>, transform_indices = @transform_5, window_bounds = array<i64: 1, 128>}, {pipeline_mode = #tpu.pipeline_mode<synchronous>, transform_indices = @transform_6, window_bounds = array<i64: 32, 128>}, {pipeline_mode = #tpu.pipeline_mode<synchronous>, transform_indices = @transform_7, window_bounds = array<i64: 32, 128>}, {pipeline_mode = #tpu.pipeline_mode<synchronous>, transform_indices = @transform_8, window_bounds = array<i64: 1, 128>}, {pipeline_mode = #tpu.pipeline_mode<synchronous>, transform_indices = @transform_9, window_bounds = array<i64: 32, 128>}, {pipeline_mode = #tpu.pipeline_mode<synchronous>, transform_indices = @transform_10, window_bounds = array<i64: 32, 128>}, {pipeline_mode = #tpu.pipeline_mode<synchronous>, transform_indices = @transform_11, window_bounds = array<i64: 1, 128>}, {pipeline_mode = #tpu.pipeline_mode<synchronous>, transform_indices = @transform_12, window_bounds = array<i64: 33, 32>}, {pipeline_mode = #tpu.pipeline_mode<synchronous>, transform_indices = @transform_13, window_bounds = array<i64: 32, 33>}, {pipeline_mode = #tpu.pipeline_mode<synchronous>, transform_indices = @transform_14, window_bounds = array<i64: 64, 32>}, {pipeline_mode = #tpu.pipeline_mode<synchronous>, transform_indices = @transform_15, window_bounds = array<i64: 1, 32>}, {pipeline_mode = #tpu.pipeline_mode<synchronous>, transform_indices = @transform_16, window_bounds = array<i64: 1, 33>}, {transform_indices = @transform_17, window_bounds = array<i64: 1, 2, 33>}, {transform_indices = @transform_18, window_bounds = array<i64: 1, 2, 16>}]} {
    %c0_i32 = arith.constant 0 : i32
    %0 = arith.cmpi eq, %arg0, %c0_i32 : i32
    %1 = arith.extui %0 : i1 to i32
    %c0_i32_0 = arith.constant 0 : i32
    %2 = arith.cmpi ne, %1, %c0_i32_0 : i32
    scf.if %2 {
      %cst_103 = arith.constant 0.000000e+00 : f32
      %174 = vector.broadcast %cst_103 : f32 to vector<3x2x32xf32>
      %c0_104 = arith.constant 0 : index
      %c0_105 = arith.constant 0 : index
      %c0_106 = arith.constant 0 : index
      %175 = vector.load %arg21[%c0_104, %c0_105, %c0_106] : memref<3x2x32xf32, #tpu.memory_space<vmem>>, vector<3x2x32xf32>
      tpu.vector_store %arg21[%c0_104, %c0_105, %c0_106], %174 {strides = array<i32>} : memref<3x2x32xf32, #tpu.memory_space<vmem>>, vector<3x2x32xf32>,
      %cst_107 = arith.constant 0.000000e+00 : f32
      %176 = vector.broadcast %cst_107 : f32 to vector<3x2x32xf32>
      %c0_108 = arith.constant 0 : index
      %c0_109 = arith.constant 0 : index
      %c0_110 = arith.constant 0 : index
      %177 = vector.load %arg22[%c0_108, %c0_109, %c0_110] : memref<3x2x32xf32, #tpu.memory_space<vmem>>, vector<3x2x32xf32>
      tpu.vector_store %arg22[%c0_108, %c0_109, %c0_110], %176 {strides = array<i32>} : memref<3x2x32xf32, #tpu.memory_space<vmem>>, vector<3x2x32xf32>,
      %cst_111 = arith.constant 0.000000e+00 : f32
      %178 = vector.broadcast %cst_111 : f32 to vector<2x32xf32>
      %c0_112 = arith.constant 0 : index
      %c0_113 = arith.constant 0 : index
      %179 = vector.load %arg23[%c0_112, %c0_113] : memref<2x32xf32, #tpu.memory_space<vmem>>, vector<2x32xf32>
      tpu.vector_store %arg23[%c0_112, %c0_113], %178 {strides = array<i32>} : memref<2x32xf32, #tpu.memory_space<vmem>>, vector<2x32xf32>,
      %cst_114 = arith.constant 0.000000e+00 : f32
      %180 = vector.broadcast %cst_114 : f32 to vector<2x33xf32>
      %c0_115 = arith.constant 0 : index
      %c0_116 = arith.constant 0 : index
      %181 = vector.load %arg24[%c0_115, %c0_116] : memref<2x33xf32, #tpu.memory_space<vmem>>, vector<2x33xf32>
      tpu.vector_store %arg24[%c0_115, %c0_116], %180 {strides = array<i32>} : memref<2x33xf32, #tpu.memory_space<vmem>>, vector<2x33xf32>,
    } else {
    }
    %3 = tpu.iota {dimensions = array<i32: 1>} : vector<2x33xi32>
    %c0 = arith.constant 0 : index
    %c0_1 = arith.constant 0 : index
    %4 = vector.load %arg24[%c0, %c0_1] : memref<2x33xf32, #tpu.memory_space<vmem>>, vector<2x33xf32>
    %cst = arith.constant dense<0xFF800000> : vector<2xf32>
    %5 = vector.multi_reduction <maximumf>, %4, %cst [1] : vector<2x33xf32> to vector<2xf32>
    %6 = vector.shape_cast %5 : vector<2xf32> to vector<2x1xf32>
    %7 = vector.broadcast %6 : vector<2x1xf32> to vector<2x33xf32>
    %8 = arith.cmpf oeq, %4, %7 : vector<2x33xf32>
    %c33_i32 = arith.constant 33 : i32
    %9 = vector.broadcast %c33_i32 : i32 to vector<2x33xi32>
    %10 = arith.select %8, %3, %9 : vector<2x33xi1>, vector<2x33xi32>
    %cst_2 = arith.constant dense<2147483647> : vector<2xi32>
    %11 = vector.multi_reduction <minsi>, %10, %cst_2 [1] : vector<2x33xi32> to vector<2xi32>
    %12 = vector.shape_cast %11 : vector<2xi32> to vector<2x1xi32>
    %13 = vector.broadcast %12 : vector<2x1xi32> to vector<2x33xi32>
    %14 = arith.cmpi eq, %3, %13 : vector<2x33xi32>
    %15 = arith.extui %14 : vector<2x33xi1> to vector<2x33xi32>
    %16 = arith.sitofp %15 : vector<2x33xi32> to vector<2x33xf32>
    %17 = arith.index_cast %arg0 : i32 to index
    %18 = memref.load %arg1[%17] : memref<8xi32, #tpu.memory_space<smem>>
    %c0_i32_3 = arith.constant 0 : i32
    %19 = arith.cmpi sgt, %18, %c0_i32_3 : i32
    %c0_4 = arith.constant 0 : index
    %c0_5 = arith.constant 0 : index
    %c0_6 = arith.constant 0 : index
    %20 = vector.load %arg4[%c0_4, %c0_5, %c0_6] : memref<1x2x33xf32, #tpu.memory_space<vmem>>, vector<1x2x33xf32>
    %21 = vector.shape_cast %20 : vector<1x2x33xf32> to vector<2x33xf32>
    %22 = arith.select %19, %21, %16 : vector<2x33xf32>
    %c0_7 = arith.constant 0 : index
    %c0_8 = arith.constant 0 : index
    %23 = vector.load %arg14[%c0_7, %c0_8] : memref<33x32xf32, #tpu.memory_space<vmem>>, vector<33x32xf32>
    %cst_9 = arith.constant dense<0.000000e+00> : vector<2x32xf32>
    %24 = tpu.matmul %22, %23, %cst_9 {dimension_numbers = #tpu.dot_dimension_numbers<[1], [0], [0], [1], [0, 0, 1, 1], [], []>} : vector<2x33xf32>, vector<33x32xf32>, vector<2x32xf32> -> vector<2x32xf32>
    %25 = tpu.iota {dimensions = array<i32: 1>} : vector<2x128xi32>
    %c64_i32 = arith.constant 64 : i32
    %26 = vector.broadcast %c64_i32 : i32 to vector<2x128xi32>
    %27 = arith.cmpi sge, %25, %26 : vector<2x128xi32>
    %c96_i32 = arith.constant 96 : i32
    %28 = vector.broadcast %c96_i32 : i32 to vector<2x128xi32>
    %29 = arith.cmpi slt, %25, %28 : vector<2x128xi32>
    %30 = arith.andi %27, %29 : vector<2x128xi1>
    %c0_10 = arith.constant 0 : index
    %c0_11 = arith.constant 0 : index
    %31 = vector.load %arg23[%c0_10, %c0_11] : memref<2x32xf32, #tpu.memory_space<vmem>>, vector<2x32xf32>
    %32 = tpu.concatenate %24, %31 in 1 : vector<2x32xf32>, vector<2x32xf32> -> vector<2x64xf32>
    %c0_12 = arith.constant 0 : index
    %c0_13 = arith.constant 0 : index
    %c0_14 = arith.constant 0 : index
    %33 = vector.load %arg21[%c0_12, %c0_13, %c0_14] : memref<3x2x32xf32, #tpu.memory_space<vmem>>, vector<1x2x32xf32>
    %34 = vector.shape_cast %33 : vector<1x2x32xf32> to vector<2x32xf32>
    %c0_15 = arith.constant 0 : index
    %c0_16 = arith.constant 0 : index
    %c0_17 = arith.constant 0 : index
    %35 = vector.load %arg22[%c0_15, %c0_16, %c0_17] : memref<3x2x32xf32, #tpu.memory_space<vmem>>, vector<1x2x32xf32>
    %36 = vector.shape_cast %35 : vector<1x2x32xf32> to vector<2x32xf32>
    %c0_18 = arith.constant 0 : index
    %c0_19 = arith.constant 0 : index
    %37 = vector.load %arg5[%c0_18, %c0_19] : memref<64x128xf32, #tpu.memory_space<vmem>>, vector<64x128xf32>
    %cst_20 = arith.constant dense<0.000000e+00> : vector<2x128xf32>
    %38 = tpu.matmul %32, %37, %cst_20 {dimension_numbers = #tpu.dot_dimension_numbers<[1], [0], [0], [1], [0, 0, 1, 1], [], []>} : vector<2x64xf32>, vector<64x128xf32>, vector<2x128xf32> -> vector<2x128xf32>
    %c0_21 = arith.constant 0 : index
    %c0_22 = arith.constant 0 : index
    %39 = vector.load %arg6[%c0_21, %c0_22] : memref<32x128xf32, #tpu.memory_space<vmem>>, vector<32x128xf32>
    %cst_23 = arith.constant dense<0.000000e+00> : vector<2x128xf32>
    %40 = tpu.matmul %34, %39, %cst_23 {dimension_numbers = #tpu.dot_dimension_numbers<[1], [0], [0], [1], [0, 0, 1, 1], [], []>} : vector<2x32xf32>, vector<32x128xf32>, vector<2x128xf32> -> vector<2x128xf32>
    %41 = arith.addf %38, %40 : vector<2x128xf32>
    %c0_24 = arith.constant 0 : index
    %c0_25 = arith.constant 0 : index
    %42 = vector.load %arg7[%c0_24, %c0_25] : memref<1x128xf32, #tpu.memory_space<vmem>>, vector<1x128xf32>
    %43 = vector.broadcast %42 : vector<1x128xf32> to vector<2x128xf32>
    %44 = arith.addf %41, %43 : vector<2x128xf32>
    %45 = math.tanh %44 : vector<2x128xf32>
    %46 = arith.negf %44 : vector<2x128xf32>
    %47 = math.exp %46 : vector<2x128xf32>
    %cst_26 = arith.constant 1.000000e+00 : f32
    %48 = vector.broadcast %cst_26 : f32 to vector<2x128xf32>
    %49 = arith.addf %48, %47 : vector<2x128xf32>
    %50 = arith.divf %48, %49 : vector<2x128xf32>
    %51 = arith.select %30, %45, %50 : vector<2x128xi1>, vector<2x128xf32>
    %52 = vector.extract_strided_slice %51 {offsets = [0, 0], sizes = [2, 32], strides = [1, 1]} : vector<2x128xf32> to vector<2x32xf32>
    %53 = vector.extract_strided_slice %51 {offsets = [0, 32], sizes = [2, 32], strides = [1, 1]} : vector<2x128xf32> to vector<2x32xf32>
    %54 = vector.extract_strided_slice %51 {offsets = [0, 64], sizes = [2, 32], strides = [1, 1]} : vector<2x128xf32> to vector<2x32xf32>
    %55 = vector.extract_strided_slice %51 {offsets = [0, 96], sizes = [2, 32], strides = [1, 1]} : vector<2x128xf32> to vector<2x32xf32>
    %56 = arith.mulf %53, %36 : vector<2x32xf32>
    %57 = arith.mulf %52, %54 : vector<2x32xf32>
    %58 = arith.addf %56, %57 : vector<2x32xf32>
    %59 = math.tanh %58 : vector<2x32xf32>
    %60 = arith.mulf %55, %59 : vector<2x32xf32>
    %c0_27 = arith.constant 0 : index
    %c0_28 = arith.constant 0 : index
    %c0_29 = arith.constant 0 : index
    %61 = vector.load %arg21[%c0_27, %c0_28, %c0_29] : memref<3x2x32xf32, #tpu.memory_space<vmem>>, vector<1x2x32xf32>
    %62 = vector.shape_cast %61 : vector<1x2x32xf32> to vector<2x32xf32>
    %63 = vector.shape_cast %60 : vector<2x32xf32> to vector<1x2x32xf32>
    tpu.vector_store %arg21[%c0_27, %c0_28, %c0_29], %63 {strides = array<i32>} : memref<3x2x32xf32, #tpu.memory_space<vmem>>, vector<1x2x32xf32>,
    %c0_30 = arith.constant 0 : index
    %c0_31 = arith.constant 0 : index
    %c0_32 = arith.constant 0 : index
    %64 = vector.load %arg22[%c0_30, %c0_31, %c0_32] : memref<3x2x32xf32, #tpu.memory_space<vmem>>, vector<1x2x32xf32>
    %65 = vector.shape_cast %64 : vector<1x2x32xf32> to vector<2x32xf32>
    %66 = vector.shape_cast %58 : vector<2x32xf32> to vector<1x2x32xf32>
    tpu.vector_store %arg22[%c0_30, %c0_31, %c0_32], %66 {strides = array<i32>} : memref<3x2x32xf32, #tpu.memory_space<vmem>>, vector<1x2x32xf32>,
    %c1 = arith.constant 1 : index
    %c0_33 = arith.constant 0 : index
    %c0_34 = arith.constant 0 : index
    %67 = vector.load %arg21[%c1, %c0_33, %c0_34] : memref<3x2x32xf32, #tpu.memory_space<vmem>>, vector<1x2x32xf32>
    %68 = vector.shape_cast %67 : vector<1x2x32xf32> to vector<2x32xf32>
    %c1_35 = arith.constant 1 : index
    %c0_36 = arith.constant 0 : index
    %c0_37 = arith.constant 0 : index
    %69 = vector.load %arg22[%c1_35, %c0_36, %c0_37] : memref<3x2x32xf32, #tpu.memory_space<vmem>>, vector<1x2x32xf32>
    %70 = vector.shape_cast %69 : vector<1x2x32xf32> to vector<2x32xf32>
    %c0_38 = arith.constant 0 : index
    %c0_39 = arith.constant 0 : index
    %71 = vector.load %arg8[%c0_38, %c0_39] : memref<32x128xf32, #tpu.memory_space<vmem>>, vector<32x128xf32>
    %cst_40 = arith.constant dense<0.000000e+00> : vector<2x128xf32>
    %72 = tpu.matmul %60, %71, %cst_40 {dimension_numbers = #tpu.dot_dimension_numbers<[1], [0], [0], [1], [0, 0, 1, 1], [], []>} : vector<2x32xf32>, vector<32x128xf32>, vector<2x128xf32> -> vector<2x128xf32>
    %c0_41 = arith.constant 0 : index
    %c0_42 = arith.constant 0 : index
    %73 = vector.load %arg9[%c0_41, %c0_42] : memref<32x128xf32, #tpu.memory_space<vmem>>, vector<32x128xf32>
    %cst_43 = arith.constant dense<0.000000e+00> : vector<2x128xf32>
    %74 = tpu.matmul %68, %73, %cst_43 {dimension_numbers = #tpu.dot_dimension_numbers<[1], [0], [0], [1], [0, 0, 1, 1], [], []>} : vector<2x32xf32>, vector<32x128xf32>, vector<2x128xf32> -> vector<2x128xf32>
    %75 = arith.addf %72, %74 : vector<2x128xf32>
    %c0_44 = arith.constant 0 : index
    %c0_45 = arith.constant 0 : index
    %76 = vector.load %arg10[%c0_44, %c0_45] : memref<1x128xf32, #tpu.memory_space<vmem>>, vector<1x128xf32>
    %77 = vector.broadcast %76 : vector<1x128xf32> to vector<2x128xf32>
    %78 = arith.addf %75, %77 : vector<2x128xf32>
    %79 = math.tanh %78 : vector<2x128xf32>
    %80 = arith.negf %78 : vector<2x128xf32>
    %81 = math.exp %80 : vector<2x128xf32>
    %cst_46 = arith.constant 1.000000e+00 : f32
    %82 = vector.broadcast %cst_46 : f32 to vector<2x128xf32>
    %83 = arith.addf %82, %81 : vector<2x128xf32>
    %84 = arith.divf %82, %83 : vector<2x128xf32>
    %85 = arith.select %30, %79, %84 : vector<2x128xi1>, vector<2x128xf32>
    %86 = vector.extract_strided_slice %85 {offsets = [0, 0], sizes = [2, 32], strides = [1, 1]} : vector<2x128xf32> to vector<2x32xf32>
    %87 = vector.extract_strided_slice %85 {offsets = [0, 32], sizes = [2, 32], strides = [1, 1]} : vector<2x128xf32> to vector<2x32xf32>
    %88 = vector.extract_strided_slice %85 {offsets = [0, 64], sizes = [2, 32], strides = [1, 1]} : vector<2x128xf32> to vector<2x32xf32>
    %89 = vector.extract_strided_slice %85 {offsets = [0, 96], sizes = [2, 32], strides = [1, 1]} : vector<2x128xf32> to vector<2x32xf32>
    %90 = arith.mulf %87, %70 : vector<2x32xf32>
    %91 = arith.mulf %86, %88 : vector<2x32xf32>
    %92 = arith.addf %90, %91 : vector<2x32xf32>
    %93 = math.tanh %92 : vector<2x32xf32>
    %94 = arith.mulf %89, %93 : vector<2x32xf32>
    %c1_47 = arith.constant 1 : index
    %c0_48 = arith.constant 0 : index
    %c0_49 = arith.constant 0 : index
    %95 = vector.load %arg21[%c1_47, %c0_48, %c0_49] : memref<3x2x32xf32, #tpu.memory_space<vmem>>, vector<1x2x32xf32>
    %96 = vector.shape_cast %95 : vector<1x2x32xf32> to vector<2x32xf32>
    %97 = vector.shape_cast %94 : vector<2x32xf32> to vector<1x2x32xf32>
    tpu.vector_store %arg21[%c1_47, %c0_48, %c0_49], %97 {strides = array<i32>} : memref<3x2x32xf32, #tpu.memory_space<vmem>>, vector<1x2x32xf32>,
    %c1_50 = arith.constant 1 : index
    %c0_51 = arith.constant 0 : index
    %c0_52 = arith.constant 0 : index
    %98 = vector.load %arg22[%c1_50, %c0_51, %c0_52] : memref<3x2x32xf32, #tpu.memory_space<vmem>>, vector<1x2x32xf32>
    %99 = vector.shape_cast %98 : vector<1x2x32xf32> to vector<2x32xf32>
    %100 = vector.shape_cast %92 : vector<2x32xf32> to vector<1x2x32xf32>
    tpu.vector_store %arg22[%c1_50, %c0_51, %c0_52], %100 {strides = array<i32>} : memref<3x2x32xf32, #tpu.memory_space<vmem>>, vector<1x2x32xf32>,
    %c2 = arith.constant 2 : index
    %c0_53 = arith.constant 0 : index
    %c0_54 = arith.constant 0 : index
    %101 = vector.load %arg21[%c2, %c0_53, %c0_54] : memref<3x2x32xf32, #tpu.memory_space<vmem>>, vector<1x2x32xf32>
    %102 = vector.shape_cast %101 : vector<1x2x32xf32> to vector<2x32xf32>
    %c2_55 = arith.constant 2 : index
    %c0_56 = arith.constant 0 : index
    %c0_57 = arith.constant 0 : index
    %103 = vector.load %arg22[%c2_55, %c0_56, %c0_57] : memref<3x2x32xf32, #tpu.memory_space<vmem>>, vector<1x2x32xf32>
    %104 = vector.shape_cast %103 : vector<1x2x32xf32> to vector<2x32xf32>
    %c0_58 = arith.constant 0 : index
    %c0_59 = arith.constant 0 : index
    %105 = vector.load %arg11[%c0_58, %c0_59] : memref<32x128xf32, #tpu.memory_space<vmem>>, vector<32x128xf32>
    %cst_60 = arith.constant dense<0.000000e+00> : vector<2x128xf32>
    %106 = tpu.matmul %94, %105, %cst_60 {dimension_numbers = #tpu.dot_dimension_numbers<[1], [0], [0], [1], [0, 0, 1, 1], [], []>} : vector<2x32xf32>, vector<32x128xf32>, vector<2x128xf32> -> vector<2x128xf32>
    %c0_61 = arith.constant 0 : index
    %c0_62 = arith.constant 0 : index
    %107 = vector.load %arg12[%c0_61, %c0_62] : memref<32x128xf32, #tpu.memory_space<vmem>>, vector<32x128xf32>
    %cst_63 = arith.constant dense<0.000000e+00> : vector<2x128xf32>
    %108 = tpu.matmul %102, %107, %cst_63 {dimension_numbers = #tpu.dot_dimension_numbers<[1], [0], [0], [1], [0, 0, 1, 1], [], []>} : vector<2x32xf32>, vector<32x128xf32>, vector<2x128xf32> -> vector<2x128xf32>
    %109 = arith.addf %106, %108 : vector<2x128xf32>
    %c0_64 = arith.constant 0 : index
    %c0_65 = arith.constant 0 : index
    %110 = vector.load %arg13[%c0_64, %c0_65] : memref<1x128xf32, #tpu.memory_space<vmem>>, vector<1x128xf32>
    %111 = vector.broadcast %110 : vector<1x128xf32> to vector<2x128xf32>
    %112 = arith.addf %109, %111 : vector<2x128xf32>
    %113 = math.tanh %112 : vector<2x128xf32>
    %114 = arith.negf %112 : vector<2x128xf32>
    %115 = math.exp %114 : vector<2x128xf32>
    %cst_66 = arith.constant 1.000000e+00 : f32
    %116 = vector.broadcast %cst_66 : f32 to vector<2x128xf32>
    %117 = arith.addf %116, %115 : vector<2x128xf32>
    %118 = arith.divf %116, %117 : vector<2x128xf32>
    %119 = arith.select %30, %113, %118 : vector<2x128xi1>, vector<2x128xf32>
    %120 = vector.extract_strided_slice %119 {offsets = [0, 0], sizes = [2, 32], strides = [1, 1]} : vector<2x128xf32> to vector<2x32xf32>
    %121 = vector.extract_strided_slice %119 {offsets = [0, 32], sizes = [2, 32], strides = [1, 1]} : vector<2x128xf32> to vector<2x32xf32>
    %122 = vector.extract_strided_slice %119 {offsets = [0, 64], sizes = [2, 32], strides = [1, 1]} : vector<2x128xf32> to vector<2x32xf32>
    %123 = vector.extract_strided_slice %119 {offsets = [0, 96], sizes = [2, 32], strides = [1, 1]} : vector<2x128xf32> to vector<2x32xf32>
    %124 = arith.mulf %121, %104 : vector<2x32xf32>
    %125 = arith.mulf %120, %122 : vector<2x32xf32>
    %126 = arith.addf %124, %125 : vector<2x32xf32>
    %127 = math.tanh %126 : vector<2x32xf32>
    %128 = arith.mulf %123, %127 : vector<2x32xf32>
    %c2_67 = arith.constant 2 : index
    %c0_68 = arith.constant 0 : index
    %c0_69 = arith.constant 0 : index
    %129 = vector.load %arg21[%c2_67, %c0_68, %c0_69] : memref<3x2x32xf32, #tpu.memory_space<vmem>>, vector<1x2x32xf32>
    %130 = vector.shape_cast %129 : vector<1x2x32xf32> to vector<2x32xf32>
    %131 = vector.shape_cast %128 : vector<2x32xf32> to vector<1x2x32xf32>
    tpu.vector_store %arg21[%c2_67, %c0_68, %c0_69], %131 {strides = array<i32>} : memref<3x2x32xf32, #tpu.memory_space<vmem>>, vector<1x2x32xf32>,
    %c2_70 = arith.constant 2 : index
    %c0_71 = arith.constant 0 : index
    %c0_72 = arith.constant 0 : index
    %132 = vector.load %arg22[%c2_70, %c0_71, %c0_72] : memref<3x2x32xf32, #tpu.memory_space<vmem>>, vector<1x2x32xf32>
    %133 = vector.shape_cast %132 : vector<1x2x32xf32> to vector<2x32xf32>
    %134 = vector.shape_cast %126 : vector<2x32xf32> to vector<1x2x32xf32>
    tpu.vector_store %arg22[%c2_70, %c0_71, %c0_72], %134 {strides = array<i32>} : memref<3x2x32xf32, #tpu.memory_space<vmem>>, vector<1x2x32xf32>,
    %c0_73 = arith.constant 0 : index
    %c0_74 = arith.constant 0 : index
    %c0_75 = arith.constant 0 : index
    %135 = vector.load %arg2[%c0_73, %c0_74, %c0_75] : memref<2x16x32xf32, #tpu.memory_space<vmem>>, vector<2x16x32xf32>
    %136 = vector.shape_cast %128 : vector<2x32xf32> to vector<2x1x32xf32>
    "tpu.trace_start"() <{level = 10 : i32, message = "nqh,nth->nqt"}> : () -> ()
    %cst_76 = arith.constant dense<0.000000e+00> : vector<2x1x16xf32>
    %137 = tpu.matmul %136, %135, %cst_76 {dimension_numbers = #tpu.dot_dimension_numbers<[2], [2], [1], [1], [0, 0, 0, 1, 1, 1], [0], [0]>} : vector<2x1x32xf32>, vector<2x16x32xf32>, vector<2x1x16xf32> -> vector<2x1x16xf32>
    "tpu.trace_stop"() : () -> ()
    %138 = vector.shape_cast %137 : vector<2x1x16xf32> to vector<2x16xf32>
    %c0_77 = arith.constant 0 : index
    %c0_78 = arith.constant 0 : index
    %139 = vector.load %arg3[%c0_77, %c0_78] : memref<2x16xf32, #tpu.memory_space<vmem>>, vector<2x16xf32>
    %140 = arith.addf %138, %139 : vector<2x16xf32>
    %cst_79 = arith.constant dense<0xFF800000> : vector<2xf32>
    %141 = vector.multi_reduction <maximumf>, %140, %cst_79 [1] : vector<2x16xf32> to vector<2xf32>
    %142 = vector.shape_cast %141 : vector<2xf32> to vector<2x1xf32>
    %143 = vector.broadcast %142 : vector<2x1xf32> to vector<2x16xf32>
    %144 = arith.subf %140, %143 : vector<2x16xf32>
    %145 = math.exp %144 : vector<2x16xf32>
    %cst_80 = arith.constant dense<0.000000e+00> : vector<2xf32>
    %146 = vector.multi_reduction <add>, %145, %cst_80 [1] : vector<2x16xf32> to vector<2xf32>
    %147 = vector.shape_cast %146 : vector<2xf32> to vector<2x1xf32>
    %148 = vector.broadcast %147 : vector<2x1xf32> to vector<2x16xf32>
    %149 = arith.divf %145, %148 : vector<2x16xf32>
    %150 = vector.shape_cast %149 : vector<2x16xf32> to vector<2x1x16xf32>
    "tpu.trace_start"() <{level = 10 : i32, message = "nqt,ntc->nqc"}> : () -> ()
    %cst_81 = arith.constant dense<0.000000e+00> : vector<2x1x32xf32>
    %151 = tpu.matmul %150, %135, %cst_81 {dimension_numbers = #tpu.dot_dimension_numbers<[2], [1], [1], [2], [0, 0, 0, 1, 1, 2], [0], [0]>} : vector<2x1x16xf32>, vector<2x16x32xf32>, vector<2x1x32xf32> -> vector<2x1x32xf32>
    "tpu.trace_stop"() : () -> ()
    %152 = vector.shape_cast %151 : vector<2x1x32xf32> to vector<2x32xf32>
    %c0_82 = arith.constant 0 : index
    %c0_83 = arith.constant 0 : index
    %153 = vector.load %arg23[%c0_82, %c0_83] : memref<2x32xf32, #tpu.memory_space<vmem>>, vector<2x32xf32>
    tpu.vector_store %arg23[%c0_82, %c0_83], %152 {strides = array<i32>} : memref<2x32xf32, #tpu.memory_space<vmem>>, vector<2x32xf32>,
    %154 = tpu.concatenate %128, %152 in 1 : vector<2x32xf32>, vector<2x32xf32> -> vector<2x64xf32>
    %c0_84 = arith.constant 0 : index
    %c0_85 = arith.constant 0 : index
    %155 = vector.load %arg16[%c0_84, %c0_85] : memref<64x32xf32, #tpu.memory_space<vmem>>, vector<64x32xf32>
    %cst_86 = arith.constant dense<0.000000e+00> : vector<2x32xf32>
    %156 = tpu.matmul %154, %155, %cst_86 {dimension_numbers = #tpu.dot_dimension_numbers<[1], [0], [0], [1], [0, 0, 1, 1], [], []>} : vector<2x64xf32>, vector<64x32xf32>, vector<2x32xf32> -> vector<2x32xf32>
    %c0_87 = arith.constant 0 : index
    %c0_88 = arith.constant 0 : index
    %157 = vector.load %arg17[%c0_87, %c0_88] : memref<1x32xf32, #tpu.memory_space<vmem>>, vector<1x32xf32>
    %158 = vector.broadcast %157 : vector<1x32xf32> to vector<2x32xf32>
    %159 = arith.addf %156, %158 : vector<2x32xf32>
    %cst_89 = arith.constant 0.000000e+00 : f32
    %160 = vector.broadcast %cst_89 : f32 to vector<2x32xf32>
    %161 = arith.maximumf %159, %160 : vector<2x32xf32>
    %c0_90 = arith.constant 0 : index
    %c0_91 = arith.constant 0 : index
    %162 = vector.load %arg15[%c0_90, %c0_91] : memref<32x33xf32, #tpu.memory_space<vmem>>, vector<32x33xf32>
    %cst_92 = arith.constant dense<0.000000e+00> : vector<2x33xf32>
    %163 = tpu.matmul %161, %162, %cst_92 {dimension_numbers = #tpu.dot_dimension_numbers<[1], [0], [0], [1], [0, 0, 1, 1], [], []>} : vector<2x32xf32>, vector<32x33xf32>, vector<2x33xf32> -> vector<2x33xf32>
    %c0_93 = arith.constant 0 : index
    %c0_94 = arith.constant 0 : index
    %164 = vector.load %arg18[%c0_93, %c0_94] : memref<1x33xf32, #tpu.memory_space<vmem>>, vector<1x33xf32>
    %165 = vector.broadcast %164 : vector<1x33xf32> to vector<2x33xf32>
    %166 = arith.addf %163, %165 : vector<2x33xf32>
    %c0_95 = arith.constant 0 : index
    %c0_96 = arith.constant 0 : index
    %167 = vector.load %arg24[%c0_95, %c0_96] : memref<2x33xf32, #tpu.memory_space<vmem>>, vector<2x33xf32>
    tpu.vector_store %arg24[%c0_95, %c0_96], %166 {strides = array<i32>} : memref<2x33xf32, #tpu.memory_space<vmem>>, vector<2x33xf32>,
    %c0_97 = arith.constant 0 : index
    %c0_98 = arith.constant 0 : index
    %c0_99 = arith.constant 0 : index
    %168 = vector.load %arg19[%c0_97, %c0_98, %c0_99] : memref<1x2x33xf32, #tpu.memory_space<vmem>>, vector<1x2x33xf32>
    %169 = vector.shape_cast %168 : vector<1x2x33xf32> to vector<2x33xf32>
    %170 = vector.shape_cast %166 : vector<2x33xf32> to vector<1x2x33xf32>
    tpu.vector_store %arg19[%c0_97, %c0_98, %c0_99], %170 {strides = array<i32>} : memref<1x2x33xf32, #tpu.memory_space<vmem>>, vector<1x2x33xf32>,
    %c0_100 = arith.constant 0 : index
    %c0_101 = arith.constant 0 : index
    %c0_102 = arith.constant 0 : index
    %171 = vector.load %arg20[%c0_100, %c0_101, %c0_102] : memref<1x2x16xf32, #tpu.memory_space<vmem>>, vector<1x2x16xf32>
    %172 = vector.shape_cast %171 : vector<1x2x16xf32> to vector<2x16xf32>
    %173 = vector.shape_cast %149 : vector<2x16xf32> to vector<1x2x16xf32>
    tpu.vector_store %arg20[%c0_100, %c0_101, %c0_102], %173 {strides = array<i32>} : memref<1x2x16xf32, #tpu.memory_space<vmem>>, vector<1x2x16xf32>,
    return
  }
  func.func @transform_0(%arg0: i32, %arg1: memref<8xi32, #tpu.memory_space<smem>>) -> (i32, i32, i32) {
    %c0_i32 = arith.constant 0 : i32
    %c0_i32_0 = arith.constant 0 : i32
    %c0_i32_1 = arith.constant 0 : i32
    %c0_i32_2 = arith.constant 0 : i32
    return %c0_i32, %c0_i32_0, %c0_i32_1 : i32, i32, i32
  }
  func.func @transform_1(%arg0: i32, %arg1: memref<8xi32, #tpu.memory_space<smem>>) -> (i32, i32) {
    %c0_i32 = arith.constant 0 : i32
    %c0_i32_0 = arith.constant 0 : i32
    %c0_i32_1 = arith.constant 0 : i32
    return %c0_i32, %c0_i32_0 : i32, i32
  }
  func.func @transform_2(%arg0: i32, %arg1: memref<8xi32, #tpu.memory_space<smem>>) -> (i32, i32, i32) {
    %c0_i32 = arith.constant 0 : i32
    %c0_i32_0 = arith.constant 0 : i32
    %c0_i32_1 = arith.constant 0 : i32
    return %arg0, %c0_i32, %c0_i32_0 : i32, i32, i32
  }
  func.func @transform_3(%arg0: i32, %arg1: memref<8xi32, #tpu.memory_space<smem>>) -> (i32, i32) {
    %c0_i32 = arith.constant 0 : i32
    %c0_i32_0 = arith.constant 0 : i32
    %c0_i32_1 = arith.constant 0 : i32
    return %c0_i32, %c0_i32_0 : i32, i32
  }
  func.func @transform_4(%arg0: i32, %arg1: memref<8xi32, #tpu.memory_space<smem>>) -> (i32, i32) {
    %c0_i32 = arith.constant 0 : i32
    %c0_i32_0 = arith.constant 0 : i32
    %c0_i32_1 = arith.constant 0 : i32
    return %c0_i32, %c0_i32_0 : i32, i32
  }
  func.func @transform_5(%arg0: i32, %arg1: memref<8xi32, #tpu.memory_space<smem>>) -> (i32, i32) {
    %c0_i32 = arith.constant 0 : i32
    %c0_i32_0 = arith.constant 0 : i32
    %c0_i32_1 = arith.constant 0 : i32
    return %c0_i32, %c0_i32_0 : i32, i32
  }
  func.func @transform_6(%arg0: i32, %arg1: memref<8xi32, #tpu.memory_space<smem>>) -> (i32, i32) {
    %c0_i32 = arith.constant 0 : i32
    %c0_i32_0 = arith.constant 0 : i32
    %c0_i32_1 = arith.constant 0 : i32
    return %c0_i32, %c0_i32_0 : i32, i32
  }
  func.func @transform_7(%arg0: i32, %arg1: memref<8xi32, #tpu.memory_space<smem>>) -> (i32, i32) {
    %c0_i32 = arith.constant 0 : i32
    %c0_i32_0 = arith.constant 0 : i32
    %c0_i32_1 = arith.constant 0 : i32
    return %c0_i32, %c0_i32_0 : i32, i32
  }
  func.func @transform_8(%arg0: i32, %arg1: memref<8xi32, #tpu.memory_space<smem>>) -> (i32, i32) {
    %c0_i32 = arith.constant 0 : i32
    %c0_i32_0 = arith.constant 0 : i32
    %c0_i32_1 = arith.constant 0 : i32
    return %c0_i32, %c0_i32_0 : i32, i32
  }
  func.func @transform_9(%arg0: i32, %arg1: memref<8xi32, #tpu.memory_space<smem>>) -> (i32, i32) {
    %c0_i32 = arith.constant 0 : i32
    %c0_i32_0 = arith.constant 0 : i32
    %c0_i32_1 = arith.constant 0 : i32
    return %c0_i32, %c0_i32_0 : i32, i32
  }
  func.func @transform_10(%arg0: i32, %arg1: memref<8xi32, #tpu.memory_space<smem>>) -> (i32, i32) {
    %c0_i32 = arith.constant 0 : i32
    %c0_i32_0 = arith.constant 0 : i32
    %c0_i32_1 = arith.constant 0 : i32
    return %c0_i32, %c0_i32_0 : i32, i32
  }
  func.func @transform_11(%arg0: i32, %arg1: memref<8xi32, #tpu.memory_space<smem>>) -> (i32, i32) {
    %c0_i32 = arith.constant 0 : i32
    %c0_i32_0 = arith.constant 0 : i32
    %c0_i32_1 = arith.constant 0 : i32
    return %c0_i32, %c0_i32_0 : i32, i32
  }
  func.func @transform_12(%arg0: i32, %arg1: memref<8xi32, #tpu.memory_space<smem>>) -> (i32, i32) {
    %c0_i32 = arith.constant 0 : i32
    %c0_i32_0 = arith.constant 0 : i32
    %c0_i32_1 = arith.constant 0 : i32
    return %c0_i32, %c0_i32_0 : i32, i32
  }
  func.func @transform_13(%arg0: i32, %arg1: memref<8xi32, #tpu.memory_space<smem>>) -> (i32, i32) {
    %c0_i32 = arith.constant 0 : i32
    %c0_i32_0 = arith.constant 0 : i32
    %c0_i32_1 = arith.constant 0 : i32
    return %c0_i32, %c0_i32_0 : i32, i32
  }
  func.func @transform_14(%arg0: i32, %arg1: memref<8xi32, #tpu.memory_space<smem>>) -> (i32, i32) {
    %c0_i32 = arith.constant 0 : i32
    %c0_i32_0 = arith.constant 0 : i32
    %c0_i32_1 = arith.constant 0 : i32
    return %c0_i32, %c0_i32_0 : i32, i32
  }
  func.func @transform_15(%arg0: i32, %arg1: memref<8xi32, #tpu.memory_space<smem>>) -> (i32, i32) {
    %c0_i32 = arith.constant 0 : i32
    %c0_i32_0 = arith.constant 0 : i32
    %c0_i32_1 = arith.constant 0 : i32
    return %c0_i32, %c0_i32_0 : i32, i32
  }
  func.func @transform_16(%arg0: i32, %arg1: memref<8xi32, #tpu.memory_space<smem>>) -> (i32, i32) {
    %c0_i32 = arith.constant 0 : i32
    %c0_i32_0 = arith.constant 0 : i32
    %c0_i32_1 = arith.constant 0 : i32
    return %c0_i32, %c0_i32_0 : i32, i32
  }
  func.func @transform_17(%arg0: i32, %arg1: memref<8xi32, #tpu.memory_space<smem>>) -> (i32, i32, i32) {
    %c0_i32 = arith.constant 0 : i32
    %c0_i32_0 = arith.constant 0 : i32
    %c0_i32_1 = arith.constant 0 : i32
    return %arg0, %c0_i32, %c0_i32_0 : i32, i32, i32
  }
  func.func @transform_18(%arg0: i32, %arg1: memref<8xi32, #tpu.memory_space<smem>>) -> (i32, i32, i32) {
    %c0_i32 = arith.constant 0 : i32
    %c0_i32_0 = arith.constant 0 : i32
    %c0_i32_1 = arith.constant 0 : i32
    return %arg0, %c0_i32, %c0_i32_0 : i32, i32, i32
  }
}

</mosaic_0001>

<llo_original>
// kernel: _decode_core.1
$region0: #{_decode_core.1}
  #allocation0 [shape = 'u32[]', space=smem, size = 0x4, offset = 0x4, fixed_abs, tag = 'smem constant byte address 0x4 - core index']
  #allocation1 [shape = 'u32[72,128]{1,0:T(1,128)}', space=vmem, size = 0x9000, scoped, tag = 'internal scratch']
  #allocation2 [shape = 'f32[3,2,32]{2,1,0:T(2,128)}', space=vmem, size = 0xc00, scoped, tag = 'scratch operand']
  #allocation3 [shape = 'f32[3,2,32]{2,1,0:T(2,128)}', space=vmem, size = 0xc00, scoped, tag = 'scratch operand']
  #allocation4 [shape = 'f32[2,32]{1,0:T(2,128)}', space=vmem, size = 0x400, scoped, tag = 'scratch operand']
  #allocation5 [shape = 'f32[2,33]{1,0:T(2,128)}', space=vmem, size = 0x400, scoped, tag = 'scratch operand']
  #allocation6 [shape = 's32[1]{0}', space=sflag, size = 0x4, scoped, tag = 'scoped memory for _decode_core.1']
  #allocation7 [shape = 'u8[512]{0}', space=smem, size = 0x200, scoped, tag = 'prefetched SMEM operand 0']
  %s0 = inlined_call_operand.vmem [shape: s32[8], index: 0, kind: input, shape index: {}]
  %s1 = inlined_call_operand.vmem [shape: f32[2,16,32], index: 1, kind: input, shape index: {}]
  %s2 = inlined_call_operand.vmem [shape: f32[2,16], index: 2, kind: input, shape index: {}]
  %s3 = inlined_call_operand.hbm [shape: f32[8,2,33], index: 3, kind: input, shape index: {}]
  %s4 = inlined_call_operand.vmem [shape: f32[64,128], index: 4, kind: input, shape index: {}]
  %s5 = inlined_call_operand.hbm [shape: f32[32,128], index: 5, kind: input, shape index: {}]
  %s6 = inlined_call_operand.vmem [shape: f32[1,128], index: 6, kind: input, shape index: {}]
  %s7 = inlined_call_operand.hbm [shape: f32[32,128], index: 7, kind: input, shape index: {}]
  %s8 = inlined_call_operand.hbm [shape: f32[32,128], index: 8, kind: input, shape index: {}]
  %s9 = inlined_call_operand.vmem [shape: f32[1,128], index: 9, kind: input, shape index: {}]
  %s10 = inlined_call_operand.hbm [shape: f32[32,128], index: 10, kind: input, shape index: {}]
  %s11 = inlined_call_operand.hbm [shape: f32[32,128], index: 11, kind: input, shape index: {}]
  %s12 = inlined_call_operand.vmem [shape: f32[1,128], index: 12, kind: input, shape index: {}]
  %s13 = inlined_call_operand.vmem [shape: f32[33,32], index: 13, kind: input, shape index: {}]
  %s14 = inlined_call_operand.vmem [shape: f32[32,33], index: 14, kind: input, shape index: {}]
  %s15 = inlined_call_operand.vmem [shape: f32[64,32], index: 15, kind: input, shape index: {}]
  %s16 = inlined_call_operand.vmem [shape: f32[1,32], index: 16, kind: input, shape index: {}]
  %s17 = inlined_call_operand.vmem [shape: f32[1,33], index: 17, kind: input, shape index: {}]
  %s18 = inlined_call_operand.hbm [shape: f32[8,2,33], index: 18, kind: output, shape index: {0}]
  %s19 = inlined_call_operand.hbm [shape: f32[8,2,16], index: 19, kind: output, shape index: {1}]
  %20 = xla_tuple %s18, %s19
  %s21 = sld [smem:[#allocation0]]
  $region137: #{_decode_core.1} parent=0
    _
  %s23 = ssub.s32 1, %s21
  %s24 = scalar_select 0, %s23, %s21
  %s26 = sshll.u32 %s0, 4
  %s27 = int_to_ptr.vmem [resolvable:$true] %s26
  %29 = dma.vmem_to_smem %s27, 16, [#allocation7], [#allocation6]
  %31 = dma.done [#allocation6], 16
  %32 = sfence
  $region1: #{_decode_core.1} parent=0
    #allocation8 [shape = 'u8[2048]{0}', space=vmem, size = 0x800, scoped, tag = 'input window, operand 3']
    #allocation9 [shape = 's32[2]{0}', space=sflag, size = 0x8, scoped, tag = 'scoped memory for _decode_core.1']
    #allocation10 [shape = 's32[2]{0}', space=sflag, size = 0x8, scoped, tag = 'scoped memory for _decode_core.1']
    #allocation11 [shape = 'u8[16384]{0}', space=vmem, size = 0x4000, scoped, tag = 'input window, operand 5, single buffered']
    #allocation12 [shape = 's32[1]{0}', space=sflag, size = 0x4, scoped, tag = 'scoped memory for _decode_core.1']
    #allocation13 [shape = 'u8[16384]{0}', space=vmem, size = 0x4000, scoped, tag = 'input window, operand 7, single buffered']
    #allocation14 [shape = 'u8[16384]{0}', space=vmem, size = 0x4000, scoped, tag = 'input window, operand 8, single buffered']
    #allocation15 [shape = 's32[1]{0}', space=sflag, size = 0x4, scoped, tag = 'scoped memory for _decode_core.1']
    #allocation16 [shape = 'u8[16384]{0}', space=vmem, size = 0x4000, scoped, tag = 'input window, operand 10, single buffered']
    #allocation17 [shape = 'u8[16384]{0}', space=vmem, size = 0x4000, scoped, tag = 'input window, operand 11, single buffered']
    #allocation18 [shape = 's32[1]{0}', space=sflag, size = 0x4, scoped, tag = 'scoped memory for _decode_core.1']
    #allocation19 [shape = 'u8[2048]{0}', space=vmem, size = 0x800, scoped, tag = 'output window, operand 0']
    #allocation20 [shape = 'u8[2048]{0}', space=vmem, size = 0x800, scoped, tag = 'output window, operand 1']
    #allocation21 [shape = 's32[2]{0}', space=sflag, size = 0x8, scoped, tag = 'scoped memory for _decode_core.1']
    %33 = vsyncpa [#allocation9], 0
    %s34 = scalar_lea.sflag [#allocation9], 1
    %35 = vsyncpa %s34, 0
    %36 = vsyncpa [#allocation12], 0
    %37 = vsyncpa [#allocation15], 0
    %38 = vsyncpa [#allocation18], 0
    %39 = vsyncpa [#allocation10], 0
    %s40 = scalar_lea.sflag [#allocation10], 1
    %41 = vsyncpa %s40, 0
    %42 = vsyncpa [#allocation21], 0
    %s43 = scalar_lea.sflag [#allocation21], 1
    %44 = vsyncpa %s43, 0
    loop: start=0, step=1, limit=10
    $region2: #{_decode_core.1} parent=1 // loop_pre_header
      _
    $region3: #{_decode_core.1} parent=1 // loop_header
      %s46 = sphi 0, %s50
      %p47 = scmp.ge.s32.totalorder %s46, 10
      %s54 = sphi 0, %s54
      %s56 = sphi 0, %s54
      %s57 = sphi 0, %s56
      %s71 = sphi 0, %s57
      %s75 = sphi 0, %s75
      %s77 = sphi 0, %s75
      %s78 = sphi 0, %s77
      %s92 = sphi 0, %s78
      %s98 = sphi 0, %s100
      %s101 = sphi 0, %s98
      %s102 = sphi 0, %s101
      %s118 = sphi 0, %s102
      %s122 = sphi 0, %s122
      %s124 = sphi 0, %s122
      %s125 = sphi 0, %s124
      %s139 = sphi 0, %s125
      %s143 = sphi 0, %s143
      %s145 = sphi 0, %s143
      %s146 = sphi 0, %s145
      %s160 = sphi 0, %s146
      %s164 = sphi 0, %s164
      %s166 = sphi 0, %s164
      %s167 = sphi 0, %s166
      %s181 = sphi 0, %s167
      %s185 = sphi 0, %s185
      %s187 = sphi 0, %s185
      %s188 = sphi 0, %s187
      %s202 = sphi 0, %s188
      %s206 = sphi 0, %s206
      %s208 = sphi 0, %s206
      %s209 = sphi 0, %s208
      %s223 = sphi 0, %s209
      %s227 = sphi 0, %s227
      %s229 = sphi 0, %s227
      %s230 = sphi 0, %s229
      %s244 = sphi 0, %s230
      %s248 = sphi 0, %s248
      %s250 = sphi 0, %s248
      %s251 = sphi 0, %s250
      %s265 = sphi 0, %s251
      %s269 = sphi 0, %s269
      %s271 = sphi 0, %s269
      %s272 = sphi 0, %s271
      %s286 = sphi 0, %s272
      %s290 = sphi 0, %s290
      %s292 = sphi 0, %s290
      %s293 = sphi 0, %s292
      %s307 = sphi 0, %s293
      %s311 = sphi 0, %s311
      %s313 = sphi 0, %s311
      %s314 = sphi 0, %s313
      %s328 = sphi 0, %s314
      %s332 = sphi 0, %s332
      %s334 = sphi 0, %s332
      %s335 = sphi 0, %s334
      %s349 = sphi 0, %s335
      %s353 = sphi 0, %s353
      %s355 = sphi 0, %s353
      %s356 = sphi 0, %s355
      %s370 = sphi 0, %s356
      %s374 = sphi 0, %s374
      %s376 = sphi 0, %s374
      %s377 = sphi 0, %s376
      %s391 = sphi 0, %s377
      %s395 = sphi 0, %s395
      %s397 = sphi 0, %s395
      %s398 = sphi 0, %s397
      %s412 = sphi 0, %s398
      %s418 = sphi 0, %s420
      %s421 = sphi 0, %s418
      %s422 = sphi 0, %s421
      %s438 = sphi 0, %s422
      %s444 = sphi 0, %s446
      %s447 = sphi 0, %s444
      %s448 = sphi 0, %s447
      %s464 = sphi 0, %s448
    $region4: #{_decode_core.1} parent=1 // loop_header_branch
      %49 = sbr.rel (%p47) target = $region8
    $region5: #{_decode_core.1} parent=1 // loop_body
      %s51 = ssub.s32 %s46, 1
      %s52 = ssub.s32 %s46, 2
      %s53 = sadd.s32 %s46, 1
      %s55 = sadd.s32 %s54, 1
      %p58 = scmp.eq.s32.totalorder %s46, 7
      %p59 = scmp.ne.s32.totalorder %s54, %s56
      %p60 = scmp.eq.s32.totalorder %s46, 0
      %p61 = por %p59, %p60
      %p62 = scmp.ne.s32.totalorder %s54, %s56
      %p63 = scmp.eq.s32.totalorder %s51, 7
      %p64 = por %p62, %p63
      %p65 = scmp.ne.s32.totalorder %s56, %s57
      %p66 = scmp.eq.s32.totalorder %s51, 0
      %p67 = por %p65, %p66
      %p68 = scmp.ne.s32.totalorder %s56, %s57
      %p69 = scmp.eq.s32.totalorder %s52, 7
      %p70 = por %p68, %p69
      %p72 = scmp.ne.s32.totalorder %s57, %s71
      %p73 = scmp.eq.s32.totalorder %s52, 0
      %p74 = por %p72, %p73
      %s76 = sadd.s32 %s75, 1
      %p79 = scmp.eq.s32.totalorder %s46, 7
      %p80 = scmp.ne.s32.totalorder %s75, %s77
      %p81 = scmp.eq.s32.totalorder %s46, 0
      %p82 = por %p80, %p81
      %p83 = scmp.ne.s32.totalorder %s75, %s77
      %p84 = scmp.eq.s32.totalorder %s51, 7
      %p85 = por %p83, %p84
      %p86 = scmp.ne.s32.totalorder %s77, %s78
      %p87 = scmp.eq.s32.totalorder %s51, 0
      %p88 = por %p86, %p87
      %p89 = scmp.ne.s32.totalorder %s77, %s78
      %p90 = scmp.eq.s32.totalorder %s52, 7
      %p91 = por %p89, %p90
      %p93 = scmp.ne.s32.totalorder %s78, %s92
      %p94 = scmp.eq.s32.totalorder %s52, 0
      %p95 = por %p93, %p94
      %s96 = ssub.s32 %s46, %s53
      %p97 = scmp.eq.s32.totalorder %s96, 0
      %s99 = sadd.s32 %s98, 1
      %s100 = scalar_select %p97, %s98, %s99
      %p103 = pneg %p97
      %p104 = scmp.eq.s32.totalorder %s46, 7
      %p105 = por %p103, %p104
      %p106 = scmp.ne.s32.totalorder %s98, %s101
      %p107 = scmp.eq.s32.totalorder %s46, 0
      %p108 = por %p106, %p107
      %p109 = scmp.ne.s32.totalorder %s98, %s101
      %p110 = scmp.eq.s32.totalorder %s51, 7
      %p111 = por %p109, %p110
      %p112 = scmp.ne.s32.totalorder %s101, %s102
      %p113 = scmp.eq.s32.totalorder %s51, 0
      %p114 = por %p112, %p113
      %p115 = scmp.ne.s32.totalorder %s101, %s102
      %p116 = scmp.eq.s32.totalorder %s52, 7
      %p117 = por %p115, %p116
      %p119 = scmp.ne.s32.totalorder %s102, %s118
      %p120 = scmp.eq.s32.totalorder %s52, 0
      %p121 = por %p119, %p120
      %s123 = sadd.s32 %s122, 1
      %p126 = scmp.eq.s32.totalorder %s46, 7
      %p127 = scmp.ne.s32.totalorder %s122, %s124
      %p128 = scmp.eq.s32.totalorder %s46, 0
      %p129 = por %p127, %p128
      %p130 = scmp.ne.s32.totalorder %s122, %s124
      %p131 = scmp.eq.s32.totalorder %s51, 7
      %p132 = por %p130, %p131
      %p133 = scmp.ne.s32.totalorder %s124, %s125
      %p134 = scmp.eq.s32.totalorder %s51, 0
      %p135 = por %p133, %p134
      %p136 = scmp.ne.s32.totalorder %s124, %s125
      %p137 = scmp.eq.s32.totalorder %s52, 7
      %p138 = por %p136, %p137
      %p140 = scmp.ne.s32.totalorder %s125, %s139
      %p141 = scmp.eq.s32.totalorder %s52, 0
      %p142 = por %p140, %p141
      %s144 = sadd.s32 %s143, 1
      %p147 = scmp.eq.s32.totalorder %s46, 7
      %p148 = scmp.ne.s32.totalorder %s143, %s145
      %p149 = scmp.eq.s32.totalorder %s46, 0
      %p150 = por %p148, %p149
      %p151 = scmp.ne.s32.totalorder %s143, %s145
      %p152 = scmp.eq.s32.totalorder %s51, 7
      %p153 = por %p151, %p152
      %p154 = scmp.ne.s32.totalorder %s145, %s146
      %p155 = scmp.eq.s32.totalorder %s51, 0
      %p156 = por %p154, %p155
      %p157 = scmp.ne.s32.totalorder %s145, %s146
      %p158 = scmp.eq.s32.totalorder %s52, 7
      %p159 = por %p157, %p158
      %p161 = scmp.ne.s32.totalorder %s146, %s160
      %p162 = scmp.eq.s32.totalorder %s52, 0
      %p163 = por %p161, %p162
      %s165 = sadd.s32 %s164, 1
      %p168 = scmp.eq.s32.totalorder %s46, 7
      %p169 = scmp.ne.s32.totalorder %s164, %s166
      %p170 = scmp.eq.s32.totalorder %s46, 0
      %p171 = por %p169, %p170
      %p172 = scmp.ne.s32.totalorder %s164, %s166
      %p173 = scmp.eq.s32.totalorder %s51, 7
      %p174 = por %p172, %p173
      %p175 = scmp.ne.s32.totalorder %s166, %s167
      %p176 = scmp.eq.s32.totalorder %s51, 0
      %p177 = por %p175, %p176
      %p178 = scmp.ne.s32.totalorder %s166, %s167
      %p179 = scmp.eq.s32.totalorder %s52, 7
      %p180 = por %p178, %p179
      %p182 = scmp.ne.s32.totalorder %s167, %s181
      %p183 = scmp.eq.s32.totalorder %s52, 0
      %p184 = por %p182, %p183
      %s186 = sadd.s32 %s185, 1
      %p189 = scmp.eq.s32.totalorder %s46, 7
      %p190 = scmp.ne.s32.totalorder %s185, %s187
      %p191 = scmp.eq.s32.totalorder %s46, 0
      %p192 = por %p190, %p191
      %p193 = scmp.ne.s32.totalorder %s185, %s187
      %p194 = scmp.eq.s32.totalorder %s51, 7
      %p195 = por %p193, %p194
      %p196 = scmp.ne.s32.totalorder %s187, %s188
      %p197 = scmp.eq.s32.totalorder %s51, 0
      %p198 = por %p196, %p197
      %p199 = scmp.ne.s32.totalorder %s187, %s188
      %p200 = scmp.eq.s32.totalorder %s52, 7
      %p201 = por %p199, %p200
      %p203 = scmp.ne.s32.totalorder %s188, %s202
      %p204 = scmp.eq.s32.totalorder %s52, 0
      %p205 = por %p203, %p204
      %s207 = sadd.s32 %s206, 1
      %p210 = scmp.eq.s32.totalorder %s46, 7
      %p211 = scmp.ne.s32.totalorder %s206, %s208
      %p212 = scmp.eq.s32.totalorder %s46, 0
      %p213 = por %p211, %p212
      %p214 = scmp.ne.s32.totalorder %s206, %s208
      %p215 = scmp.eq.s32.totalorder %s51, 7
      %p216 = por %p214, %p215
      %p217 = scmp.ne.s32.totalorder %s208, %s209
      %p218 = scmp.eq.s32.totalorder %s51, 0
      %p219 = por %p217, %p218
      %p220 = scmp.ne.s32.totalorder %s208, %s209
      %p221 = scmp.eq.s32.totalorder %s52, 7
      %p222 = por %p220, %p221
      %p224 = scmp.ne.s32.totalorder %s209, %s223
      %p225 = scmp.eq.s32.totalorder %s52, 0
      %p226 = por %p224, %p225
      %s228 = sadd.s32 %s227, 1
      %p231 = scmp.eq.s32.totalorder %s46, 7
      %p232 = scmp.ne.s32.totalorder %s227, %s229
      %p233 = scmp.eq.s32.totalorder %s46, 0
      %p234 = por %p232, %p233
      %p235 = scmp.ne.s32.totalorder %s227, %s229
      %p236 = scmp.eq.s32.totalorder %s51, 7
      %p237 = por %p235, %p236
      %p238 = scmp.ne.s32.totalorder %s229, %s230
      %p239 = scmp.eq.s32.totalorder %s51, 0
      %p240 = por %p238, %p239
      %p241 = scmp.ne.s32.totalorder %s229, %s230
      %p242 = scmp.eq.s32.totalorder %s52, 7
      %p243 = por %p241, %p242
      %p245 = scmp.ne.s32.totalorder %s230, %s244
      %p246 = scmp.eq.s32.totalorder %s52, 0
      %p247 = por %p245, %p246
      %s249 = sadd.s32 %s248, 1
      %p252 = scmp.eq.s32.totalorder %s46, 7
      %p253 = scmp.ne.s32.totalorder %s248, %s250
      %p254 = scmp.eq.s32.totalorder %s46, 0
      %p255 = por %p253, %p254
      %p256 = scmp.ne.s32.totalorder %s248, %s250
      %p257 = scmp.eq.s32.totalorder %s51, 7
      %p258 = por %p256, %p257
      %p259 = scmp.ne.s32.totalorder %s250, %s251
      %p260 = scmp.eq.s32.totalorder %s51, 0
      %p261 = por %p259, %p260
      %p262 = scmp.ne.s32.totalorder %s250, %s251
      %p263 = scmp.eq.s32.totalorder %s52, 7
      %p264 = por %p262, %p263
      %p266 = scmp.ne.s32.totalorder %s251, %s265
      %p267 = scmp.eq.s32.totalorder %s52, 0
      %p268 = por %p266, %p267
      %s270 = sadd.s32 %s269, 1
      %p273 = scmp.eq.s32.totalorder %s46, 7
      %p274 = scmp.ne.s32.totalorder %s269, %s271
      %p275 = scmp.eq.s32.totalorder %s46, 0
      %p276 = por %p274, %p275
      %p277 = scmp.ne.s32.totalorder %s269, %s271
      %p278 = scmp.eq.s32.totalorder %s51, 7
      %p279 = por %p277, %p278
      %p280 = scmp.ne.s32.totalorder %s271, %s272
      %p281 = scmp.eq.s32.totalorder %s51, 0
      %p282 = por %p280, %p281
      %p283 = scmp.ne.s32.totalorder %s271, %s272
      %p284 = scmp.eq.s32.totalorder %s52, 7
      %p285 = por %p283, %p284
      %p287 = scmp.ne.s32.totalorder %s272, %s286
      %p288 = scmp.eq.s32.totalorder %s52, 0
      %p289 = por %p287, %p288
      %s291 = sadd.s32 %s290, 1
      %p294 = scmp.eq.s32.totalorder %s46, 7
      %p295 = scmp.ne.s32.totalorder %s290, %s292
      %p296 = scmp.eq.s32.totalorder %s46, 0
      %p297 = por %p295, %p296
      %p298 = scmp.ne.s32.totalorder %s290, %s292
      %p299 = scmp.eq.s32.totalorder %s51, 7
      %p300 = por %p298, %p299
      %p301 = scmp.ne.s32.totalorder %s292, %s293
      %p302 = scmp.eq.s32.totalorder %s51, 0
      %p303 = por %p301, %p302
      %p304 = scmp.ne.s32.totalorder %s292, %s293
      %p305 = scmp.eq.s32.totalorder %s52, 7
      %p306 = por %p304, %p305
      %p308 = scmp.ne.s32.totalorder %s293, %s307
      %p309 = scmp.eq.s32.totalorder %s52, 0
      %p310 = por %p308, %p309
      %s312 = sadd.s32 %s311, 1
      %p315 = scmp.eq.s32.totalorder %s46, 7
      %p316 = scmp.ne.s32.totalorder %s311, %s313
      %p317 = scmp.eq.s32.totalorder %s46, 0
      %p318 = por %p316, %p317
      %p319 = scmp.ne.s32.totalorder %s311, %s313
      %p320 = scmp.eq.s32.totalorder %s51, 7
      %p321 = por %p319, %p320
      %p322 = scmp.ne.s32.totalorder %s313, %s314
      %p323 = scmp.eq.s32.totalorder %s51, 0
      %p324 = por %p322, %p323
      %p325 = scmp.ne.s32.totalorder %s313, %s314
      %p326 = scmp.eq.s32.totalorder %s52, 7
      %p327 = por %p325, %p326
      %p329 = scmp.ne.s32.totalorder %s314, %s328
      %p330 = scmp.eq.s32.totalorder %s52, 0
      %p331 = por %p329, %p330
      %s333 = sadd.s32 %s332, 1
      %p336 = scmp.eq.s32.totalorder %s46, 7
      %p337 = scmp.ne.s32.totalorder %s332, %s334
      %p338 = scmp.eq.s32.totalorder %s46, 0
      %p339 = por %p337, %p338
      %p340 = scmp.ne.s32.totalorder %s332, %s334
      %p341 = scmp.eq.s32.totalorder %s51, 7
      %p342 = por %p340, %p341
      %p343 = scmp.ne.s32.totalorder %s334, %s335
      %p344 = scmp.eq.s32.totalorder %s51, 0
      %p345 = por %p343, %p344
      %p346 = scmp.ne.s32.totalorder %s334, %s335
      %p347 = scmp.eq.s32.totalorder %s52, 7
      %p348 = por %p346, %p347
      %p350 = scmp.ne.s32.totalorder %s335, %s349
      %p351 = scmp.eq.s32.totalorder %s52, 0
      %p352 = por %p350, %p351
      %s354 = sadd.s32 %s353, 1
      %p357 = scmp.eq.s32.totalorder %s46, 7
      %p358 = scmp.ne.s32.totalorder %s353, %s355
      %p359 = scmp.eq.s32.totalorder %s46, 0
      %p360 = por %p358, %p359
      %p361 = scmp.ne.s32.totalorder %s353, %s355
      %p362 = scmp.eq.s32.totalorder %s51, 7
      %p363 = por %p361, %p362
      %p364 = scmp.ne.s32.totalorder %s355, %s356
      %p365 = scmp.eq.s32.totalorder %s51, 0
      %p366 = por %p364, %p365
      %p367 = scmp.ne.s32.totalorder %s355, %s356
      %p368 = scmp.eq.s32.totalorder %s52, 7
      %p369 = por %p367, %p368
      %p371 = scmp.ne.s32.totalorder %s356, %s370
      %p372 = scmp.eq.s32.totalorder %s52, 0
      %p373 = por %p371, %p372
      %s375 = sadd.s32 %s374, 1
      %p378 = scmp.eq.s32.totalorder %s46, 7
      %p379 = scmp.ne.s32.totalorder %s374, %s376
      %p380 = scmp.eq.s32.totalorder %s46, 0
      %p381 = por %p379, %p380
      %p382 = scmp.ne.s32.totalorder %s374, %s376
      %p383 = scmp.eq.s32.totalorder %s51, 7
      %p384 = por %p382, %p383
      %p385 = scmp.ne.s32.totalorder %s376, %s377
      %p386 = scmp.eq.s32.totalorder %s51, 0
      %p387 = por %p385, %p386
      %p388 = scmp.ne.s32.totalorder %s376, %s377
      %p389 = scmp.eq.s32.totalorder %s52, 7
      %p390 = por %p388, %p389
      %p392 = scmp.ne.s32.totalorder %s377, %s391
      %p393 = scmp.eq.s32.totalorder %s52, 0
      %p394 = por %p392, %p393
      %s396 = sadd.s32 %s395, 1
      %p399 = scmp.eq.s32.totalorder %s46, 7
      %p400 = scmp.ne.s32.totalorder %s395, %s397
      %p401 = scmp.eq.s32.totalorder %s46, 0
      %p402 = por %p400, %p401
      %p403 = scmp.ne.s32.totalorder %s395, %s397
      %p404 = scmp.eq.s32.totalorder %s51, 7
      %p405 = por %p403, %p404
      %p406 = scmp.ne.s32.totalorder %s397, %s398
      %p407 = scmp.eq.s32.totalorder %s51, 0
      %p408 = por %p406, %p407
      %p409 = scmp.ne.s32.totalorder %s397, %s398
      %p410 = scmp.eq.s32.totalorder %s52, 7
      %p411 = por %p409, %p410
      %p413 = scmp.ne.s32.totalorder %s398, %s412
      %p414 = scmp.eq.s32.totalorder %s52, 0
      %p415 = por %p413, %p414
      %s416 = ssub.s32 %s46, %s53
      %p417 = scmp.eq.s32.totalorder %s416, 0
      %s419 = sadd.s32 %s418, 1
      %s420 = scalar_select %p417, %s418, %s419
      %p423 = pneg %p417
      %p424 = scmp.eq.s32.totalorder %s46, 7
      %p425 = por %p423, %p424
      %p426 = scmp.ne.s32.totalorder %s418, %s421
      %p427 = scmp.eq.s32.totalorder %s46, 0
      %p428 = por %p426, %p427
      %p429 = scmp.ne.s32.totalorder %s418, %s421
      %p430 = scmp.eq.s32.totalorder %s51, 7
      %p431 = por %p429, %p430
      %p432 = scmp.ne.s32.totalorder %s421, %s422
      %p433 = scmp.eq.s32.totalorder %s51, 0
      %p434 = por %p432, %p433
      %p435 = scmp.ne.s32.totalorder %s421, %s422
      %p436 = scmp.eq.s32.totalorder %s52, 7
      %p437 = por %p435, %p436
      %p439 = scmp.ne.s32.totalorder %s422, %s438
      %p440 = scmp.eq.s32.totalorder %s52, 0
      %p441 = por %p439, %p440
      %s442 = ssub.s32 %s46, %s53
      %p443 = scmp.eq.s32.totalorder %s442, 0
      %s445 = sadd.s32 %s444, 1
      %s446 = scalar_select %p443, %s444, %s445
      %p449 = pneg %p443
      %p450 = scmp.eq.s32.totalorder %s46, 7
      %p451 = por %p449, %p450
      %p452 = scmp.ne.s32.totalorder %s444, %s447
      %p453 = scmp.eq.s32.totalorder %s46, 0
      %p454 = por %p452, %p453
      %p455 = scmp.ne.s32.totalorder %s444, %s447
      %p456 = scmp.eq.s32.totalorder %s51, 7
      %p457 = por %p455, %p456
      %p458 = scmp.ne.s32.totalorder %s447, %s448
      %p459 = scmp.eq.s32.totalorder %s51, 0
      %p460 = por %p458, %p459
      %p461 = scmp.ne.s32.totalorder %s447, %s448
      %p462 = scmp.eq.s32.totalorder %s52, 7
      %p463 = por %p461, %p462
      %p465 = scmp.ne.s32.totalorder %s448, %s464
      %p466 = scmp.eq.s32.totalorder %s52, 0
      %p467 = por %p465, %p466
      %p468 = scmp.le.s32.totalorder 1, %s46
      %p469 = scmp.lt.s32.totalorder %s46, 9
      %p470 = pnand %p468, %p469
      %p471 = pneg %p470
      // Predicated region
      $region9: #{_decode_core.1} parent=5 // pred_check
        _
      $region10: #{_decode_core.1} parent=5 // pred_check_branch
        %473 = sbr.rel (%p470) target = $region12
      $region11: #{_decode_core.1} parent=5 // pred_region
        %s474 = ssub.s32 %s46, 1
        // Predicated region
        $region13: #{_decode_core.1} parent=11 // pred_check
          %p475 = pneg %p67
        $region14: #{_decode_core.1} parent=11 // pred_check_branch
          %477 = sbr.rel (%p475) target = $region16
        $region15: #{_decode_core.1} parent=11 // pred_region
          _
        $region16: #{_decode_core.1} parent=11 // pred_fallthru
          _
        // Predicated region
        $region17: #{_decode_core.1} parent=11 // pred_check
          %p478 = pneg %p88
        $region18: #{_decode_core.1} parent=11 // pred_check_branch
          %480 = sbr.rel (%p478) target = $region20
        $region19: #{_decode_core.1} parent=11 // pred_region
          _
        $region20: #{_decode_core.1} parent=11 // pred_fallthru
          _
        // Predicated region
        $region21: #{_decode_core.1} parent=11 // pred_check
          %p481 = pneg %p135
        $region22: #{_decode_core.1} parent=11 // pred_check_branch
          %483 = sbr.rel (%p481) target = $region24
        $region23: #{_decode_core.1} parent=11 // pred_region
          _
        $region24: #{_decode_core.1} parent=11 // pred_fallthru
          _
        // Predicated region
        $region25: #{_decode_core.1} parent=11 // pred_check
          %p484 = pneg %p156
        $region26: #{_decode_core.1} parent=11 // pred_check_branch
          %486 = sbr.rel (%p484) target = $region28
        $region27: #{_decode_core.1} parent=11 // pred_region
          %488 = vsyncadd [#allocation12], 0
          %s489 = sshll.u32 %s5, 4
          %s490 = int_to_ptr.hbm [resolvable:$true] %s489
          %s491 = sshll.u32 [#allocation11], 4
          %s492 = int_to_ptr.vmem [resolvable:$true] %s491
          %497 = dma.hbm_to_vmem [thread:$0]  %s490, 512, %s492, [#allocation12], 128, 128, 8
        $region28: #{_decode_core.1} parent=11 // pred_fallthru
          _
        // Predicated region
        $region29: #{_decode_core.1} parent=11 // pred_check
          %p498 = pneg %p177
        $region30: #{_decode_core.1} parent=11 // pred_check_branch
          %500 = sbr.rel (%p498) target = $region32
        $region31: #{_decode_core.1} parent=11 // pred_region
          _
        $region32: #{_decode_core.1} parent=11 // pred_fallthru
          _
        // Predicated region
        $region33: #{_decode_core.1} parent=11 // pred_check
          %p501 = pneg %p198
        $region34: #{_decode_core.1} parent=11 // pred_check_branch
          %503 = sbr.rel (%p501) target = $region36
        $region35: #{_decode_core.1} parent=11 // pred_region
          %505 = vsyncadd [#allocation12], 0
          %s506 = sshll.u32 %s7, 4
          %s507 = int_to_ptr.hbm [resolvable:$true] %s506
          %s508 = sshll.u32 [#allocation13], 4
          %s509 = int_to_ptr.vmem [resolvable:$true] %s508
          %514 = dma.hbm_to_vmem [thread:$0]  %s507, 512, %s509, [#allocation12], 128, 128, 8
        $region36: #{_decode_core.1} parent=11 // pred_fallthru
          _
        // Predicated region
        $region37: #{_decode_core.1} parent=11 // pred_check
          %p515 = pneg %p219
        $region38: #{_decode_core.1} parent=11 // pred_check_branch
          %517 = sbr.rel (%p515) target = $region40
        $region39: #{_decode_core.1} parent=11 // pred_region
          %519 = vsyncadd [#allocation15], 0
          %s520 = sshll.u32 %s8, 4
          %s521 = int_to_ptr.hbm [resolvable:$true] %s520
          %s522 = sshll.u32 [#allocation14], 4
          %s523 = int_to_ptr.vmem [resolvable:$true] %s522
          %528 = dma.hbm_to_vmem [thread:$0]  %s521, 512, %s523, [#allocation15], 128, 128, 8
        $region40: #{_decode_core.1} parent=11 // pred_fallthru
          _
        // Predicated region
        $region41: #{_decode_core.1} parent=11 // pred_check
          %p529 = pneg %p240
        $region42: #{_decode_core.1} parent=11 // pred_check_branch
          %531 = sbr.rel (%p529) target = $region44
        $region43: #{_decode_core.1} parent=11 // pred_region
          _
        $region44: #{_decode_core.1} parent=11 // pred_fallthru
          _
        // Predicated region
        $region45: #{_decode_core.1} parent=11 // pred_check
          %p532 = pneg %p261
        $region46: #{_decode_core.1} parent=11 // pred_check_branch
          %534 = sbr.rel (%p532) target = $region48
        $region47: #{_decode_core.1} parent=11 // pred_region
          %536 = vsyncadd [#allocation15], 0
          %s537 = sshll.u32 %s10, 4
          %s538 = int_to_ptr.hbm [resolvable:$true] %s537
          %s539 = sshll.u32 [#allocation16], 4
          %s540 = int_to_ptr.vmem [resolvable:$true] %s539
          %545 = dma.hbm_to_vmem [thread:$0]  %s538, 512, %s540, [#allocation15], 128, 128, 8
        $region48: #{_decode_core.1} parent=11 // pred_fallthru
          _
        // Predicated region
        $region49: #{_decode_core.1} parent=11 // pred_check
          %p546 = pneg %p282
        $region50: #{_decode_core.1} parent=11 // pred_check_branch
          %548 = sbr.rel (%p546) target = $region52
        $region51: #{_decode_core.1} parent=11 // pred_region
          %550 = vsyncadd [#allocation18], 0
          %s551 = sshll.u32 %s11, 4
          %s552 = int_to_ptr.hbm [resolvable:$true] %s551
          %s553 = sshll.u32 [#allocation17], 4
          %s554 = int_to_ptr.vmem [resolvable:$true] %s553
          %559 = dma.hbm_to_vmem [thread:$0]  %s552, 512, %s554, [#allocation18], 128, 128, 8
        $region52: #{_decode_core.1} parent=11 // pred_fallthru
          _
        // Predicated region
        $region53: #{_decode_core.1} parent=11 // pred_check
          %p560 = pneg %p303
        $region54: #{_decode_core.1} parent=11 // pred_check_branch
          %562 = sbr.rel (%p560) target = $region56
        $region55: #{_decode_core.1} parent=11 // pred_region
          _
        $region56: #{_decode_core.1} parent=11 // pred_fallthru
          _
        // Predicated region
        $region57: #{_decode_core.1} parent=11 // pred_check
          %p563 = pneg %p324
        $region58: #{_decode_core.1} parent=11 // pred_check_branch
          %565 = sbr.rel (%p563) target = $region60
        $region59: #{_decode_core.1} parent=11 // pred_region
          _
        $region60: #{_decode_core.1} parent=11 // pred_fallthru
          _
        // Predicated region
        $region61: #{_decode_core.1} parent=11 // pred_check
          %p566 = pneg %p345
        $region62: #{_decode_core.1} parent=11 // pred_check_branch
          %568 = sbr.rel (%p566) target = $region64
        $region63: #{_decode_core.1} parent=11 // pred_region
          _
        $region64: #{_decode_core.1} parent=11 // pred_fallthru
          _
        // Predicated region
        $region65: #{_decode_core.1} parent=11 // pred_check
          %p569 = pneg %p366
        $region66: #{_decode_core.1} parent=11 // pred_check_branch
          %571 = sbr.rel (%p569) target = $region68
        $region67: #{_decode_core.1} parent=11 // pred_region
          _
        $region68: #{_decode_core.1} parent=11 // pred_fallthru
          _
        // Predicated region
        $region69: #{_decode_core.1} parent=11 // pred_check
          %p572 = pneg %p387
        $region70: #{_decode_core.1} parent=11 // pred_check_branch
          %574 = sbr.rel (%p572) target = $region72
        $region71: #{_decode_core.1} parent=11 // pred_region
          _
        $region72: #{_decode_core.1} parent=11 // pred_fallthru
          _
        // Predicated region
        $region73: #{_decode_core.1} parent=11 // pred_check
          %p575 = pneg %p408
        $region74: #{_decode_core.1} parent=11 // pred_check_branch
          %577 = sbr.rel (%p575) target = $region76
        $region75: #{_decode_core.1} parent=11 // pred_region
          _
        $region76: #{_decode_core.1} parent=11 // pred_fallthru
          _
      $region12: #{_decode_core.1} parent=5 // pred_fallthru
        _
      %p578 = scmp.lt.s32.totalorder %s46, 8
      // Predicated region
      $region77: #{_decode_core.1} parent=5 // pred_check
        %p579 = pneg %p578
      $region78: #{_decode_core.1} parent=5 // pred_check_branch
        %581 = sbr.rel (%p579) target = $region80
      $region79: #{_decode_core.1} parent=5 // pred_region
        // Predicated region
        $region81: #{_decode_core.1} parent=79 // pred_check
          %p582 = pneg %p108
        $region82: #{_decode_core.1} parent=79 // pred_check_branch
          %584 = sbr.rel (%p582) target = $region84
        $region83: #{_decode_core.1} parent=79 // pred_region
          %s585 = sand.u32 %s98, 1
          %s586 = scalar_lea.sflag [#allocation9], %s585
          %s587 = sand.u32 %s98, 1
          %s588 = smul.addr %s587, 2
          %s589 = scalar_lea.vmem [#allocation8], %s588
          %591 = vsyncadd %s586, 0
          %s592 = smul.addr %s46, 2
          %s593 = scalar_lea.hbm %s3, %s592
          %s595 = sshll.u32 %s593, 4
          %s596 = int_to_ptr.hbm [resolvable:$true] %s595
          %s597 = sshll.u32 %s589, 4
          %s598 = int_to_ptr.vmem [resolvable:$true] %s597
          %600 = dma.hbm_to_vmem [thread:$0]  %s596, 32, %s598, %s586
        $region84: #{_decode_core.1} parent=79 // pred_fallthru
          _
      $region80: #{_decode_core.1} parent=5 // pred_fallthru
        _
      %p601 = scmp.le.s32.totalorder 1, %s46
      %p602 = scmp.lt.s32.totalorder %s46, 9
      %p603 = pnand %p601, %p602
      %p604 = pneg %p603
      // Predicated region
      $region85: #{_decode_core.1} parent=5 // pred_check
        _
      $region86: #{_decode_core.1} parent=5 // pred_check_branch
        %606 = sbr.rel (%p603) target = $region88
      $region87: #{_decode_core.1} parent=5 // pred_region
        %s607 = ssub.s32 %s46, 1
        %s608 = sand.u32 %s101, 1
        %s609 = scalar_lea.sflag [#allocation9], %s608
        %s610 = sand.u32 %s101, 1
        %s611 = smul.addr %s610, 2
        %s612 = scalar_lea.vmem [#allocation8], %s611
        // Predicated region
        $region89: #{_decode_core.1} parent=87 // pred_check
          %p613 = pneg %p114
        $region90: #{_decode_core.1} parent=87 // pred_check_branch
          %615 = sbr.rel (%p613) target = $region92
        $region91: #{_decode_core.1} parent=87 // pred_region
          %617 = dma.done %s609, 32
        $region92: #{_decode_core.1} parent=87 // pred_fallthru
          _
        // Predicated region
        $region93: #{_decode_core.1} parent=87 // pred_check
          %p618 = pneg %p156
        $region94: #{_decode_core.1} parent=87 // pred_check_branch
          %620 = sbr.rel (%p618) target = $region96
        $region95: #{_decode_core.1} parent=87 // pred_region
          %622 = dma.done [#allocation12], 512
        $region96: #{_decode_core.1} parent=87 // pred_fallthru
          _
        // Predicated region
        $region97: #{_decode_core.1} parent=87 // pred_check
          %p623 = pneg %p198
        $region98: #{_decode_core.1} parent=87 // pred_check_branch
          %625 = sbr.rel (%p623) target = $region100
        $region99: #{_decode_core.1} parent=87 // pred_region
          %627 = dma.done [#allocation12], 512
        $region100: #{_decode_core.1} parent=87 // pred_fallthru
          _
        // Predicated region
        $region101: #{_decode_core.1} parent=87 // pred_check
          %p628 = pneg %p219
        $region102: #{_decode_core.1} parent=87 // pred_check_branch
          %630 = sbr.rel (%p628) target = $region104
        $region103: #{_decode_core.1} parent=87 // pred_region
          %632 = dma.done [#allocation15], 512
        $region104: #{_decode_core.1} parent=87 // pred_fallthru
          _
        // Predicated region
        $region105: #{_decode_core.1} parent=87 // pred_check
          %p633 = pneg %p261
        $region106: #{_decode_core.1} parent=87 // pred_check_branch
          %635 = sbr.rel (%p633) target = $region108
        $region107: #{_decode_core.1} parent=87 // pred_region
          %637 = dma.done [#allocation15], 512
        $region108: #{_decode_core.1} parent=87 // pred_fallthru
          _
        // Predicated region
        $region109: #{_decode_core.1} parent=87 // pred_check
          %p638 = pneg %p282
        $region110: #{_decode_core.1} parent=87 // pred_check_branch
          %640 = sbr.rel (%p638) target = $region112
        $region111: #{_decode_core.1} parent=87 // pred_region
          %642 = dma.done [#allocation18], 512
        $region112: #{_decode_core.1} parent=87 // pred_fallthru
          _
        %p643 = pneg %p67
        %p644 = pneg %p64
        %p645 = pneg %p88
        %p646 = pneg %p85
        %s647 = sand.u32 %s101, 1
        %s648 = scalar_lea.sflag [#allocation9], %s647
        %s649 = sand.u32 %s101, 1
        %s650 = smul.addr %s649, 2
        %s651 = scalar_lea.vmem [#allocation8], %s650
        %p652 = pneg %p114
        %p653 = pneg %p111
        %p654 = pneg %p135
        %p655 = pneg %p132
        %p656 = pneg %p156
        %p657 = pneg %p153
        %p658 = pneg %p177
        %p659 = pneg %p174
        %p660 = pneg %p198
        %p661 = pneg %p195
        %p662 = pneg %p219
        %p663 = pneg %p216
        %p664 = pneg %p240
        %p665 = pneg %p237
        %p666 = pneg %p261
        %p667 = pneg %p258
        %p668 = pneg %p282
        %p669 = pneg %p279
        %p670 = pneg %p303
        %p671 = pneg %p300
        %p672 = pneg %p324
        %p673 = pneg %p321
        %p674 = pneg %p345
        %p675 = pneg %p342
        %p676 = pneg %p366
        %p677 = pneg %p363
        %p678 = pneg %p387
        %p679 = pneg %p384
        %p680 = pneg %p408
        %p681 = pneg %p405
        %p682 = pneg %p434
        %p683 = pneg %p431
        %s684 = sand.u32 %s421, 1
        %s685 = scalar_lea.sflag [#allocation10], %s684
        %s686 = sand.u32 %s421, 1
        %s687 = smul.addr %s686, 2
        %s688 = scalar_lea.vmem [#allocation19], %s687
        %p689 = pneg %p460
        %p690 = pneg %p457
        %s691 = sand.u32 %s447, 1
        %s692 = scalar_lea.sflag [#allocation21], %s691
        %s693 = sand.u32 %s447, 1
        %s694 = smul.addr %s693, 2
        %s695 = scalar_lea.vmem [#allocation20], %s694
        %p696 = scmp.eq.s32.totalorder %s51, 0
        // Predicated region
        $region113: #{_decode_core.1} parent=87 // pred_check
          %p697 = pneg %p696
        $region114: #{_decode_core.1} parent=87 // pred_check_branch
          %699 = sbr.rel (%p697) target = $region116
        $region115: #{_decode_core.1} parent=87 // pred_region
          %vm700 = vcmask 254976
          %701 = vst.msk [vmem:[#allocation2] sm:$0x3] %vm700, 0.0
          %702 = vst.msk [vmem:[#allocation2 + $0x2] sm:$0x3] %vm700, 0.0
          %703 = vst.msk [vmem:[#allocation2 + $0x4] sm:$0x3] %vm700, 0.0
          %704 = vst.msk [vmem:[#allocation3] sm:$0x3] %vm700, 0.0
          %705 = vst.msk [vmem:[#allocation3 + $0x2] sm:$0x3] %vm700, 0.0
          %706 = vst.msk [vmem:[#allocation3 + $0x4] sm:$0x3] %vm700, 0.0
          %707 = vst.msk [vmem:[#allocation4] sm:$0x3] %vm700, 0.0
          %vm708 = vcmask 263168
          %709 = vst.msk [vmem:[#allocation5] sm:$0x3] %vm708, 0.0
        $region116: #{_decode_core.1} parent=87 // pred_fallthru
          _
        %v710 = vlaneseq
        %v711 = vand.u32 %v710, 127
        %v712 = vld [vmem:[#allocation5] sm:$0x3]
        %vm713 = vcmask 263168
        %v714 = vsel %vm713, %v712, -inf
        %715 = vmax.xlane.f32.xlu0 %v714
        %v716 = vpop.xlane.xlu0 %715
        %vm717 = vcmp.eq.f32.partialorder %v712, %v716
        %v718 = vsel %vm717, %v711, 33
        %v719 = vsel %vm713, %v718, 2147483647
        %v720 = vand.u32 %v719, 65535
        %v721 = vshra.s32 %v719, 16
        %v722 = vcvt.s32.f32 %v720
        %v723 = vcvt.s32.f32 %v721
        %724 = vmin.xlane.f32.xlu0 %v723
        %v725 = vpop.xlane.xlu0 %724
        %vm726 = vcmp.eq.f32.partialorder %v723, %v725
        %v727 = vsel %vm726, %v722, inf
        %728 = vmin.xlane.f32.xlu0 %v727
        %v729 = vpop.xlane.xlu0 %728
        %v730 = vcvt.f32.s32 %v729
        %v731 = vcvt.f32.s32 %v725
        %v732 = vshll.u32 %v731, 16
        %v733 = vadd.s32 %v732, %v730
        %vm734 = vcmp.eq.s32.totalorder %v711, %v733
        %v735 = vsel %vm734, 1, 0
        %v736 = vcvt.s32.f32 %v735
        %s737 = sld [smem:[#allocation7 + %s51]]
        %p738 = scmp.gt.s32.totalorder %s737, 0
        %v739 = vld [vmem:[%s612] sm:$0x3]
        %s740 = scalar_select %p738, 1, 0
        %v741 = vstv %s740
        %vm742 = vcmp.eq.s32.totalorder %v741, 1
        %v743 = vsel %vm742, %v739, %v736
        %v744 = vld [vmem:[%s13] sm:$0xff]
        %v745 = vld [vmem:[%s13 + $0x8] sm:$0xff]
        %v746 = vld [vmem:[%s13 + $0x10] sm:$0xff]
        %v747 = vld [vmem:[%s13 + $0x18] sm:$0xff]
        %v748 = vld [vmem:[%s13 + $0x20] sm:$0x1]
        %vm749 = vcmask 269312
        %v751 = vsel %vm749, %v743, 0
        %vm753 = vcmask 1040384
        %v755 = vsel %vm753, %v748, 0
        %757 = vmatpush.msra.mxu0 0.0
        %758 = vmatpush.msra.mxu0 0.0
        %759 = vmatpush.msra.mxu0 0.0
        %760 = vmatpush.msra.mxu0 0.0
        %761 = vmatpush.msra.mxu0 0.0
        %762 = vmatpush.msra.mxu0 0.0
        %763 = vmatpush.msra.mxu0 0.0
        %764 = vmatpush.msra.mxu0 0.0
        %765 = vmatpush.msra.mxu0 0.0
        %766 = vmatpush.msra.mxu0 0.0
        %767 = vmatpush.msra.mxu0 0.0
        %768 = vmatpush.msra.mxu0 %v755
        %769 = vmatpush.msra.mxu0 %v747
        %770 = vmatpush.msra.mxu0 %v746
        %771 = vmatpush.msra.mxu0 %v745
        %772 = vmatpush.msra.mxu0 %v744
        %773 = vmatmul.f32.gmra.mxu0 %v751
        %v774 = vpop.f32.mrf.mxu0
        %v775 = vadd.f32 0.0, %v774
        %776 = vdwg.mxu0
        %vm777 = vcmp.ge.s32.totalorder %v711, 64
        %vm778 = vcmp.lt.s32.totalorder %v711, 96
        %vm779 = vmand %vm777, %vm778
        %v780 = vld [vmem:[#allocation4] sm:$0x3]
        %782 = vrot.lane.b32.xlu0 %v780, 32
        %v783 = vpop.permute.xlu0 %782
        %vm785 = vcmask 261120
        %v786 = vsel %vm785, %v775, %v783
        %v787 = vld [vmem:[#allocation2] sm:$0x3]
        %v788 = vld [vmem:[#allocation3] sm:$0x3]
        %v789 = vld [vmem:[%s4] sm:$0xff]
        %v790 = vld [vmem:[%s4 + $0x8] sm:$0xff]
        %v791 = vld [vmem:[%s4 + $0x10] sm:$0xff]
        %v792 = vld [vmem:[%s4 + $0x18] sm:$0xff]
        %v793 = vld [vmem:[%s4 + $0x20] sm:$0xff]
        %v794 = vld [vmem:[%s4 + $0x28] sm:$0xff]
        %v795 = vld [vmem:[%s4 + $0x30] sm:$0xff]
        %v796 = vld [vmem:[%s4 + $0x38] sm:$0xff]
        %v797 = vld [vmem:[#allocation11] sm:$0xff]
        %v798 = vld [vmem:[#allocation11 + $0x8] sm:$0xff]
        %v799 = vld [vmem:[#allocation11 + $0x10] sm:$0xff]
        %v800 = vld [vmem:[#allocation11 + $0x18] sm:$0xff]
        %v802 = vsel %vm785, %v787, 0
        %804 = vmatpush.msra.mxu0 0.0
        %805 = vmatpush.msra.mxu0 0.0
        %806 = vmatpush.msra.mxu0 0.0
        %807 = vmatpush.msra.mxu0 0.0
        %808 = vmatpush.msra.mxu0 0.0
        %809 = vmatpush.msra.mxu0 0.0
        %810 = vmatpush.msra.mxu0 0.0
        %811 = vmatpush.msra.mxu0 0.0
        %812 = vmatpush.msra.mxu0 0.0
        %813 = vmatpush.msra.mxu0 0.0
        %814 = vmatpush.msra.mxu0 0.0
        %815 = vmatpush.msra.mxu0 0.0
        %816 = vmatpush.msra.mxu0 %v800
        %817 = vmatpush.msra.mxu0 %v799
        %818 = vmatpush.msra.mxu0 %v798
        %819 = vmatpush.msra.mxu0 %v797
        %820 = vmatmul.f32.gmra.mxu0 %v802
        %v821 = vpop.f32.mrf.mxu0
        %v822 = vadd.f32 0.0, %v821
        %823 = vdwg.mxu0
        %vm824 = vcmask 523264
        %v826 = vsel %vm824, %v786, 0
        %828 = vmatpush.msra.mxu0 0.0
        %829 = vmatpush.msra.mxu0 0.0
        %830 = vmatpush.msra.mxu0 0.0
        %831 = vmatpush.msra.mxu0 0.0
        %832 = vmatpush.msra.mxu0 0.0
        %833 = vmatpush.msra.mxu0 0.0
        %834 = vmatpush.msra.mxu0 0.0
        %835 = vmatpush.msra.mxu0 0.0
        %836 = vmatpush.msra.mxu0 %v796
        %837 = vmatpush.msra.mxu0 %v795
        %838 = vmatpush.msra.mxu0 %v794
        %839 = vmatpush.msra.mxu0 %v793
        %840 = vmatpush.msra.mxu0 %v792
        %841 = vmatpush.msra.mxu0 %v791
        %842 = vmatpush.msra.mxu0 %v790
        %843 = vmatpush.msra.mxu0 %v789
        %844 = vmatmul.f32.gmra.mxu0 %v826
        %v845 = vpop.f32.mrf.mxu0
        %v846 = vadd.f32 %v822, %v845
        %847 = vdwg.mxu0
        %v848 = vld [vmem:[%s6] sm:$0x1]
        %v850 = vperm.slane %v848, 0
        %v852 = vadd.f32 %v846, %v850
        %v853 = vtanh.pop %v852
        %v854 = vxor.u32 %v852, 2147483648
        %v855 = vmul.f32 %v854, 1.442695
        %v856 = vpow.pop %v855
        %v857 = vadd.f32 %v856, 1.0
        %v858 = vrcp.pop %v857
        %v859 = vmul.f32 %v857, %v858
        %v860 = vsub.f32 1.0, %v859
        %v861 = vmul.f32 %v858, %v860
        %v862 = vadd.f32 %v858, %v861
        %vm863 = vweird.f32 %v857
        %vm864 = vweird.f32 %v858
        %vm865 = vmor %vm863, %vm864
        %v866 = vsel %vm865, %v858, %v862
        %v867 = vand.u32 2147483647, %v857
        %vm868 = vcmp.eq.f32.partialorder %v867, 8.507059e+37
        %v869 = vand.u32 %v857, 2147483648
        %v870 = vor.u32 1.1754944e-38, %v869
        %v871 = vsel %vm868, %v870, %v866
        %v872 = vmul.f32 1.0, %v871
        %v873 = vsel %vm779, %v853, %v872
        %875 = vrot.lane.b32.xlu0 %v788, 32
        %v876 = vpop.permute.xlu0 %875
        %v878 = vmul.f32 %v873, %v876
        %880 = vrot.lane.b32.xlu0 %v873, 64
        %v881 = vpop.permute.xlu0 %880
        %v883 = vmul.f32 %v873, %v881
        %885 = vrot.lane.b32.xlu0 %v883, 32
        %v886 = vpop.permute.xlu0 %885
        %v888 = vadd.f32 %v878, %v886
        %v889 = vtanh.pop %v888
        %891 = vrot.lane.b32.xlu0 %v889, 64
        %v892 = vpop.permute.xlu0 %891
        %v894 = vmul.f32 %v873, %v892
        %896 = vrot.lane.b32.xlu0 %v894, 32
        %v897 = vpop.permute.xlu0 %896
        %vm899 = vcmask 254976
        %900 = vst.msk [vmem:[#allocation2] sm:$0x3] %vm899, %v897
        %902 = vrot.lane.b32.xlu0 %v888, 96
        %v903 = vpop.permute.xlu0 %902
        %905 = vst.msk [vmem:[#allocation3] sm:$0x3] %vm899, %v903
        %s906 = scalar_lea.vmem [#allocation2], 2
        %v907 = vld [vmem:[%s906] sm:$0x3]
        %s908 = scalar_lea.vmem [#allocation3], 2
        %v909 = vld [vmem:[%s908] sm:$0x3]
        %v910 = vld [vmem:[#allocation13] sm:$0xff]
        %v911 = vld [vmem:[#allocation13 + $0x8] sm:$0xff]
        %v912 = vld [vmem:[#allocation13 + $0x10] sm:$0xff]
        %v913 = vld [vmem:[#allocation13 + $0x18] sm:$0xff]
        %v914 = vld [vmem:[#allocation14] sm:$0xff]
        %v915 = vld [vmem:[#allocation14 + $0x8] sm:$0xff]
        %v916 = vld [vmem:[#allocation14 + $0x10] sm:$0xff]
        %v917 = vld [vmem:[#allocation14 + $0x18] sm:$0xff]
        %v919 = vsel %vm785, %v907, 0
        %921 = vmatpush.msra.mxu0 0.0
        %922 = vmatpush.msra.mxu0 0.0
        %923 = vmatpush.msra.mxu0 0.0
        %924 = vmatpush.msra.mxu0 0.0
        %925 = vmatpush.msra.mxu0 0.0
        %926 = vmatpush.msra.mxu0 0.0
        %927 = vmatpush.msra.mxu0 0.0
        %928 = vmatpush.msra.mxu0 0.0
        %929 = vmatpush.msra.mxu0 0.0
        %930 = vmatpush.msra.mxu0 0.0
        %931 = vmatpush.msra.mxu0 0.0
        %932 = vmatpush.msra.mxu0 0.0
        %933 = vmatpush.msra.mxu0 %v917
        %934 = vmatpush.msra.mxu0 %v916
        %935 = vmatpush.msra.mxu0 %v915
        %936 = vmatpush.msra.mxu0 %v914
        %937 = vmatmul.f32.gmra.mxu0 %v919
        %v938 = vpop.f32.mrf.mxu0
        %v939 = vadd.f32 0.0, %v938
        %940 = vdwg.mxu0
        %v941 = vsel %vm785, %v897, 0
        %943 = vmatpush.msra.mxu0 0.0
        %944 = vmatpush.msra.mxu0 0.0
        %945 = vmatpush.msra.mxu0 0.0
        %946 = vmatpush.msra.mxu0 0.0
        %947 = vmatpush.msra.mxu0 0.0
        %948 = vmatpush.msra.mxu0 0.0
        %949 = vmatpush.msra.mxu0 0.0
        %950 = vmatpush.msra.mxu0 0.0
        %951 = vmatpush.msra.mxu0 0.0
        %952 = vmatpush.msra.mxu0 0.0
        %953 = vmatpush.msra.mxu0 0.0
        %954 = vmatpush.msra.mxu0 0.0
        %955 = vmatpush.msra.mxu0 %v913
        %956 = vmatpush.msra.mxu0 %v912
        %957 = vmatpush.msra.mxu0 %v911
        %958 = vmatpush.msra.mxu0 %v910
        %959 = vmatmul.f32.gmra.mxu0 %v941
        %v960 = vpop.f32.mrf.mxu0
        %v961 = vadd.f32 %v939, %v960
        %962 = vdwg.mxu0
        %v963 = vld [vmem:[%s9] sm:$0x1]
        %v965 = vperm.slane %v963, 0
        %v967 = vadd.f32 %v961, %v965
        %v968 = vtanh.pop %v967
        %v969 = vxor.u32 %v967, 2147483648
        %v970 = vmul.f32 %v969, 1.442695
        %v971 = vpow.pop %v970
        %v972 = vadd.f32 %v971, 1.0
        %v973 = vrcp.pop %v972
        %v974 = vmul.f32 %v972, %v973
        %v975 = vsub.f32 1.0, %v974
        %v976 = vmul.f32 %v973, %v975
        %v977 = vadd.f32 %v973, %v976
        %vm978 = vweird.f32 %v972
        %vm979 = vweird.f32 %v973
        %vm980 = vmor %vm978, %vm979
        %v981 = vsel %vm980, %v973, %v977
        %v982 = vand.u32 2147483647, %v972
        %vm983 = vcmp.eq.f32.partialorder %v982, 8.507059e+37
        %v984 = vand.u32 %v972, 2147483648
        %v985 = vor.u32 1.1754944e-38, %v984
        %v986 = vsel %vm983, %v985, %v981
        %v987 = vmul.f32 1.0, %v986
        %v988 = vsel %vm779, %v968, %v987
        %990 = vrot.lane.b32.xlu0 %v909, 32
        %v991 = vpop.permute.xlu0 %990
        %v993 = vmul.f32 %v988, %v991
        %995 = vrot.lane.b32.xlu0 %v988, 64
        %v996 = vpop.permute.xlu0 %995
        %v998 = vmul.f32 %v988, %v996
        %1000 = vrot.lane.b32.xlu0 %v998, 32
        %v1001 = vpop.permute.xlu0 %1000
        %v1003 = vadd.f32 %v993, %v1001
        %v1004 = vtanh.pop %v1003
        %1006 = vrot.lane.b32.xlu0 %v1004, 64
        %v1007 = vpop.permute.xlu0 %1006
        %v1009 = vmul.f32 %v988, %v1007
        %1011 = vrot.lane.b32.xlu0 %v1009, 32
        %v1012 = vpop.permute.xlu0 %1011
        %1014 = vst.msk [vmem:[%s906] sm:$0x3] %vm899, %v1012
        %1016 = vrot.lane.b32.xlu0 %v1003, 96
        %v1017 = vpop.permute.xlu0 %1016
        %1019 = vst.msk [vmem:[%s908] sm:$0x3] %vm899, %v1017
        %s1020 = scalar_lea.vmem [#allocation2], 4
        %v1021 = vld [vmem:[%s1020] sm:$0x3]
        %s1022 = scalar_lea.vmem [#allocation3], 4
        %v1023 = vld [vmem:[%s1022] sm:$0x3]
        %v1024 = vld [vmem:[#allocation16] sm:$0xff]
        %v1025 = vld [vmem:[#allocation16 + $0x8] sm:$0xff]
        %v1026 = vld [vmem:[#allocation16 + $0x10] sm:$0xff]
        %v1027 = vld [vmem:[#allocation16 + $0x18] sm:$0xff]
        %v1028 = vld [vmem:[#allocation17] sm:$0xff]
        %v1029 = vld [vmem:[#allocation17 + $0x8] sm:$0xff]
        %v1030 = vld [vmem:[#allocation17 + $0x10] sm:$0xff]
        %v1031 = vld [vmem:[#allocation17 + $0x18] sm:$0xff]
        %v1033 = vsel %vm785, %v1021, 0
        %1035 = vmatpush.msra.mxu0 0.0
        %1036 = vmatpush.msra.mxu0 0.0
        %1037 = vmatpush.msra.mxu0 0.0
        %1038 = vmatpush.msra.mxu0 0.0
        %1039 = vmatpush.msra.mxu0 0.0
        %1040 = vmatpush.msra.mxu0 0.0
        %1041 = vmatpush.msra.mxu0 0.0
        %1042 = vmatpush.msra.mxu0 0.0
        %1043 = vmatpush.msra.mxu0 0.0
        %1044 = vmatpush.msra.mxu0 0.0
        %1045 = vmatpush.msra.mxu0 0.0
        %1046 = vmatpush.msra.mxu0 0.0
        %1047 = vmatpush.msra.mxu0 %v1031
        %1048 = vmatpush.msra.mxu0 %v1030
        %1049 = vmatpush.msra.mxu0 %v1029
        %1050 = vmatpush.msra.mxu0 %v1028
        %1051 = vmatmul.f32.gmra.mxu0 %v1033
        %v1052 = vpop.f32.mrf.mxu0
        %v1053 = vadd.f32 0.0, %v1052
        %1054 = vdwg.mxu0
        %v1055 = vsel %vm785, %v1012, 0
        %1057 = vmatpush.msra.mxu0 0.0
        %1058 = vmatpush.msra.mxu0 0.0
        %1059 = vmatpush.msra.mxu0 0.0
        %1060 = vmatpush.msra.mxu0 0.0
        %1061 = vmatpush.msra.mxu0 0.0
        %1062 = vmatpush.msra.mxu0 0.0
        %1063 = vmatpush.msra.mxu0 0.0
        %1064 = vmatpush.msra.mxu0 0.0
        %1065 = vmatpush.msra.mxu0 0.0
        %1066 = vmatpush.msra.mxu0 0.0
        %1067 = vmatpush.msra.mxu0 0.0
        %1068 = vmatpush.msra.mxu0 0.0
        %1069 = vmatpush.msra.mxu0 %v1027
        %1070 = vmatpush.msra.mxu0 %v1026
        %1071 = vmatpush.msra.mxu0 %v1025
        %1072 = vmatpush.msra.mxu0 %v1024
        %1073 = vmatmul.f32.gmra.mxu0 %v1055
        %v1074 = vpop.f32.mrf.mxu0
        %v1075 = vadd.f32 %v1053, %v1074
        %1076 = vdwg.mxu0
        %v1077 = vld [vmem:[%s12] sm:$0x1]
        %v1079 = vperm.slane %v1077, 0
        %v1081 = vadd.f32 %v1075, %v1079
        %v1082 = vtanh.pop %v1081
        %v1083 = vxor.u32 %v1081, 2147483648
        %v1084 = vmul.f32 %v1083, 1.442695
        %v1085 = vpow.pop %v1084
        %v1086 = vadd.f32 %v1085, 1.0
        %v1087 = vrcp.pop %v1086
        %v1088 = vmul.f32 %v1086, %v1087
        %v1089 = vsub.f32 1.0, %v1088
        %v1090 = vmul.f32 %v1087, %v1089
        %v1091 = vadd.f32 %v1087, %v1090
        %vm1092 = vweird.f32 %v1086
        %vm1093 = vweird.f32 %v1087
        %vm1094 = vmor %vm1092, %vm1093
        %v1095 = vsel %vm1094, %v1087, %v1091
        %v1096 = vand.u32 2147483647, %v1086
        %vm1097 = vcmp.eq.f32.partialorder %v1096, 8.507059e+37
        %v1098 = vand.u32 %v1086, 2147483648
        %v1099 = vor.u32 1.1754944e-38, %v1098
        %v1100 = vsel %vm1097, %v1099, %v1095
        %v1101 = vmul.f32 1.0, %v1100
        %v1102 = vsel %vm779, %v1082, %v1101
        %1104 = vrot.lane.b32.xlu0 %v1023, 32
        %v1105 = vpop.permute.xlu0 %1104
        %v1107 = vmul.f32 %v1102, %v1105
        %1109 = vrot.lane.b32.xlu0 %v1102, 64
        %v1110 = vpop.permute.xlu0 %1109
        %v1112 = vmul.f32 %v1102, %v1110
        %1114 = vrot.lane.b32.xlu0 %v1112, 32
        %v1115 = vpop.permute.xlu0 %1114
        %v1117 = vadd.f32 %v1107, %v1115
        %v1118 = vtanh.pop %v1117
        %1120 = vrot.lane.b32.xlu0 %v1118, 64
        %v1121 = vpop.permute.xlu0 %1120
        %v1123 = vmul.f32 %v1102, %v1121
        %1125 = vrot.lane.b32.xlu0 %v1123, 32
        %v1126 = vpop.permute.xlu0 %1125
        %1128 = vst.msk [vmem:[%s1020] sm:$0x3] %vm899, %v1126
        %1130 = vrot.lane.b32.xlu0 %v1117, 96
        %v1131 = vpop.permute.xlu0 %1130
        %1133 = vst.msk [vmem:[%s1022] sm:$0x3] %vm899, %v1131
        %v1134 = vld [vmem:[%s1] sm:$0xff]
        %v1135 = vld [vmem:[%s1 + $0x8] sm:$0xff]
        %v1136 = vld [vmem:[%s1 + $0x10] sm:$0xff]
        %v1137 = vld [vmem:[%s1 + $0x18] sm:$0xff]
        %v1138 = vrot.slane %v1123, 1
        %v1139 = vperm.slane %v1123, 0
        %1140 = vrot.lane.b32.xlu0 %v1139, 32
        %v1141 = vpop.permute.xlu0 %1140
        %v1142 = vsel %vm785, %v1141, 0
        %v1145 = vsel %vm785, %v1134, 0
        %v1148 = vsel %vm785, %v1135, 0
        %1150 = vmatpush.xpose.msra.mxu0 0.0
        %1151 = vmatpush.xpose.msra.mxu0 0.0
        %1152 = vmatpush.xpose.msra.mxu0 0.0
        %1153 = vmatpush.xpose.msra.mxu0 0.0
        %1154 = vmatpush.xpose.msra.mxu0 0.0
        %1155 = vmatpush.xpose.msra.mxu0 0.0
        %1156 = vmatpush.xpose.msra.mxu0 0.0
        %1157 = vmatpush.xpose.msra.mxu0 0.0
        %1158 = vmatpush.xpose.msra.mxu0 0.0
        %1159 = vmatpush.xpose.msra.mxu0 0.0
        %1160 = vmatpush.xpose.msra.mxu0 0.0
        %1161 = vmatpush.xpose.msra.mxu0 0.0
        %1162 = vmatpush.xpose.msra.mxu0 0.0
        %1163 = vmatpush.xpose.msra.mxu0 0.0
        %1164 = vmatpush.xpose.msra.mxu0 %v1148
        %1165 = vmatpush.xpose.msra.mxu0 %v1145
        %1166 = vmatmul.f32.gmra.mxu0 %v1142
        %v1167 = vpop.f32.mrf.mxu0
        %v1168 = vadd.f32 0.0, %v1167
        %1169 = vdwg.mxu0
        %v1170 = vperm.slane %v1138, 0
        %1171 = vrot.lane.b32.xlu0 %v1170, 32
        %v1172 = vpop.permute.xlu0 %1171
        %v1173 = vsel %vm785, %v1172, 0
        %v1176 = vsel %vm785, %v1136, 0
        %v1179 = vsel %vm785, %v1137, 0
        %1181 = vmatpush.xpose.msra.mxu0 0.0
        %1182 = vmatpush.xpose.msra.mxu0 0.0
        %1183 = vmatpush.xpose.msra.mxu0 0.0
        %1184 = vmatpush.xpose.msra.mxu0 0.0
        %1185 = vmatpush.xpose.msra.mxu0 0.0
        %1186 = vmatpush.xpose.msra.mxu0 0.0
        %1187 = vmatpush.xpose.msra.mxu0 0.0
        %1188 = vmatpush.xpose.msra.mxu0 0.0
        %1189 = vmatpush.xpose.msra.mxu0 0.0
        %1190 = vmatpush.xpose.msra.mxu0 0.0
        %1191 = vmatpush.xpose.msra.mxu0 0.0
        %1192 = vmatpush.xpose.msra.mxu0 0.0
        %1193 = vmatpush.xpose.msra.mxu0 0.0
        %1194 = vmatpush.xpose.msra.mxu0 0.0
        %1195 = vmatpush.xpose.msra.mxu0 %v1179
        %1196 = vmatpush.xpose.msra.mxu0 %v1176
        %1197 = vmatmul.f32.gmra.mxu0 %v1173
        %v1198 = vpop.f32.mrf.mxu0
        %v1199 = vadd.f32 0.0, %v1198
        %1200 = vdwg.mxu0
        %v1201 = vld [vmem:[%s2] sm:$0x3]
        %v1203 = vrot.slane %v1201, 1
        %v1206 = vadd.f32 %v1168, %v1201
        %v1207 = vadd.f32 %v1199, %v1203
        %v1210 = vrot.slane %v1207, 7
        %vm1211 = vcmask 1041409
        %v1212 = vsel %vm1211, %v1210, %v1206
        %vm1214 = vcmask 123904
        %v1215 = vsel %vm1214, %v1212, -inf
        %1216 = vmax.xlane.f32.xlu0 %v1215
        %v1217 = vpop.xlane.xlu0 %1216
        %v1219 = vrot.slane %v1217, 1
        %v1222 = vsub.f32 %v1206, %v1217
        %v1223 = vsub.f32 %v1207, %v1219
        %v1224 = vmul.f32 %v1222, 1.442695
        %v1225 = vpow.pop %v1224
        %v1226 = vmul.f32 %v1223, 1.442695
        %v1227 = vpow.pop %v1226
        %v1230 = vrot.slane %v1227, 7
        %v1231 = vsel %vm1211, %v1230, %v1225
        %v1233 = vsel %vm1214, %v1231, 0.0
        %1234 = vadd.xlane.f32.xlu0 %v1233
        %v1235 = vpop.xlane.xlu0 %1234
        %v1237 = vrot.slane %v1235, 1
        %v1240 = vrcp.pop %v1235
        %v1241 = vmul.f32 %v1235, %v1240
        %v1242 = vsub.f32 1.0, %v1241
        %v1243 = vmul.f32 %v1240, %v1242
        %v1244 = vadd.f32 %v1240, %v1243
        %vm1245 = vweird.f32 %v1235
        %vm1246 = vweird.f32 %v1240
        %vm1247 = vmor %vm1245, %vm1246
        %v1248 = vsel %vm1247, %v1240, %v1244
        %v1249 = vand.u32 2147483647, %v1235
        %vm1250 = vcmp.eq.f32.partialorder %v1249, 8.507059e+37
        %v1251 = vand.u32 %v1235, 2147483648
        %v1252 = vor.u32 1.1754944e-38, %v1251
        %v1253 = vsel %vm1250, %v1252, %v1248
        %v1254 = vmul.f32 %v1225, %v1253
        %v1255 = vrcp.pop %v1237
        %v1256 = vmul.f32 %v1237, %v1255
        %v1257 = vsub.f32 1.0, %v1256
        %v1258 = vmul.f32 %v1255, %v1257
        %v1259 = vadd.f32 %v1255, %v1258
        %vm1260 = vweird.f32 %v1237
        %vm1261 = vweird.f32 %v1255
        %vm1262 = vmor %vm1260, %vm1261
        %v1263 = vsel %vm1262, %v1255, %v1259
        %v1264 = vand.u32 2147483647, %v1237
        %vm1265 = vcmp.eq.f32.partialorder %v1264, 8.507059e+37
        %v1266 = vand.u32 %v1237, 2147483648
        %v1267 = vor.u32 1.1754944e-38, %v1266
        %v1268 = vsel %vm1265, %v1267, %v1263
        %v1269 = vmul.f32 %v1227, %v1268
        %vm1270 = vcmask 130048
        %v1272 = vsel %vm1270, %v1254, 0
        %1274 = vmatpush.msra.mxu0 0.0
        %1275 = vmatpush.msra.mxu0 0.0
        %1276 = vmatpush.msra.mxu0 0.0
        %1277 = vmatpush.msra.mxu0 0.0
        %1278 = vmatpush.msra.mxu0 0.0
        %1279 = vmatpush.msra.mxu0 0.0
        %1280 = vmatpush.msra.mxu0 0.0
        %1281 = vmatpush.msra.mxu0 0.0
        %1282 = vmatpush.msra.mxu0 0.0
        %1283 = vmatpush.msra.mxu0 0.0
        %1284 = vmatpush.msra.mxu0 0.0
        %1285 = vmatpush.msra.mxu0 0.0
        %1286 = vmatpush.msra.mxu0 0.0
        %1287 = vmatpush.msra.mxu0 0.0
        %1288 = vmatpush.msra.mxu0 %v1135
        %1289 = vmatpush.msra.mxu0 %v1134
        %1290 = vmatmul.f32.gmra.mxu0 %v1272
        %v1291 = vpop.f32.mrf.mxu0
        %v1292 = vadd.f32 0.0, %v1291
        %1293 = vdwg.mxu0
        %v1295 = vsel %vm1270, %v1269, 0
        %1297 = vmatpush.msra.mxu0 0.0
        %1298 = vmatpush.msra.mxu0 0.0
        %1299 = vmatpush.msra.mxu0 0.0
        %1300 = vmatpush.msra.mxu0 0.0
        %1301 = vmatpush.msra.mxu0 0.0
        %1302 = vmatpush.msra.mxu0 0.0
        %1303 = vmatpush.msra.mxu0 0.0
        %1304 = vmatpush.msra.mxu0 0.0
        %1305 = vmatpush.msra.mxu0 0.0
        %1306 = vmatpush.msra.mxu0 0.0
        %1307 = vmatpush.msra.mxu0 0.0
        %1308 = vmatpush.msra.mxu0 0.0
        %1309 = vmatpush.msra.mxu0 0.0
        %1310 = vmatpush.msra.mxu0 0.0
        %1311 = vmatpush.msra.mxu0 %v1137
        %1312 = vmatpush.msra.mxu0 %v1136
        %1313 = vmatmul.f32.gmra.mxu0 %v1295
        %v1314 = vpop.f32.mrf.mxu0
        %v1315 = vadd.f32 0.0, %v1314
        %1316 = vdwg.mxu0
        %v1319 = vrot.slane %v1315, 7
        %v1320 = vsel %vm1211, %v1319, %v1292
        %1322 = vst.msk [vmem:[#allocation4] sm:$0x3] %vm899, %v1320
        %1323 = vrot.lane.b32.xlu0 %v1320, 32
        %v1324 = vpop.permute.xlu0 %1323
        %v1326 = vsel %vm785, %v1126, %v1324
        %v1327 = vld [vmem:[%s15] sm:$0xff]
        %v1328 = vld [vmem:[%s15 + $0x8] sm:$0xff]
        %v1329 = vld [vmem:[%s15 + $0x10] sm:$0xff]
        %v1330 = vld [vmem:[%s15 + $0x18] sm:$0xff]
        %v1331 = vld [vmem:[%s15 + $0x20] sm:$0xff]
        %v1332 = vld [vmem:[%s15 + $0x28] sm:$0xff]
        %v1333 = vld [vmem:[%s15 + $0x30] sm:$0xff]
        %v1334 = vld [vmem:[%s15 + $0x38] sm:$0xff]
        %v1335 = vld [vmem:[%s16] sm:$0x1]
        %v1337 = vperm.slane %v1335, 0
        %v1340 = vsel %vm824, %v1326, 0
        %1342 = vmatpush.msra.mxu0 0.0
        %1343 = vmatpush.msra.mxu0 0.0
        %1344 = vmatpush.msra.mxu0 0.0
        %1345 = vmatpush.msra.mxu0 0.0
        %1346 = vmatpush.msra.mxu0 0.0
        %1347 = vmatpush.msra.mxu0 0.0
        %1348 = vmatpush.msra.mxu0 0.0
        %1349 = vmatpush.msra.mxu0 0.0
        %1350 = vmatpush.msra.mxu0 %v1334
        %1351 = vmatpush.msra.mxu0 %v1333
        %1352 = vmatpush.msra.mxu0 %v1332
        %1353 = vmatpush.msra.mxu0 %v1331
        %1354 = vmatpush.msra.mxu0 %v1330
        %1355 = vmatpush.msra.mxu0 %v1329
        %1356 = vmatpush.msra.mxu0 %v1328
        %1357 = vmatpush.msra.mxu0 %v1327
        %1358 = vmatmul.f32.gmra.mxu0 %v1340
        %v1359 = vpop.f32.mrf.mxu0
        %v1360 = vadd.f32 %v1337, %v1359
        %1361 = vdwg.mxu0
        %v1362 = vmax.f32 %v1360, 0.0
        %v1363 = vld [vmem:[%s14] sm:$0xff]
        %v1364 = vld [vmem:[%s14 + $0x8] sm:$0xff]
        %v1365 = vld [vmem:[%s14 + $0x10] sm:$0xff]
        %v1366 = vld [vmem:[%s14 + $0x18] sm:$0xff]
        %v1367 = vld [vmem:[%s17] sm:$0x1]
        %v1369 = vperm.slane %v1367, 0
        %v1372 = vsel %vm785, %v1362, 0
        %1374 = vmatpush.msra.mxu0 0.0
        %1375 = vmatpush.msra.mxu0 0.0
        %1376 = vmatpush.msra.mxu0 0.0
        %1377 = vmatpush.msra.mxu0 0.0
        %1378 = vmatpush.msra.mxu0 0.0
        %1379 = vmatpush.msra.mxu0 0.0
        %1380 = vmatpush.msra.mxu0 0.0
        %1381 = vmatpush.msra.mxu0 0.0
        %1382 = vmatpush.msra.mxu0 0.0
        %1383 = vmatpush.msra.mxu0 0.0
        %1384 = vmatpush.msra.mxu0 0.0
        %1385 = vmatpush.msra.mxu0 0.0
        %1386 = vmatpush.msra.mxu0 %v1366
        %1387 = vmatpush.msra.mxu0 %v1365
        %1388 = vmatpush.msra.mxu0 %v1364
        %1389 = vmatpush.msra.mxu0 %v1363
        %1390 = vmatmul.f32.gmra.mxu0 %v1372
        %v1391 = vpop.f32.mrf.mxu0
        %v1392 = vadd.f32 %v1369, %v1391
        %1393 = vdwg.mxu0
        %1394 = vst.msk [vmem:[#allocation5] sm:$0x3] %vm713, %v1392
        %1395 = vst.msk [vmem:[%s688] sm:$0x3] %vm713, %v1392
        %v1396 = vrot.slane %v1269, 7
        %v1397 = vsel %vm1211, %v1396, %v1254
        %1399 = vst.msk [vmem:[%s695] sm:$0x3] %vm1214, %v1397
        %s1400 = sand.u32 %s421, 1
        %s1401 = scalar_lea.sflag [#allocation10], %s1400
        %s1402 = sand.u32 %s421, 1
        %s1403 = smul.addr %s1402, 2
        %s1404 = scalar_lea.vmem [#allocation19], %s1403
        %s1405 = sand.u32 %s447, 1
        %s1406 = scalar_lea.sflag [#allocation21], %s1405
        %s1407 = sand.u32 %s447, 1
        %s1408 = smul.addr %s1407, 2
        %s1409 = scalar_lea.vmem [#allocation20], %s1408
        // Predicated region
        $region117: #{_decode_core.1} parent=87 // pred_check
          %p1410 = pneg %p431
        $region118: #{_decode_core.1} parent=87 // pred_check_branch
          %1412 = sbr.rel (%p1410) target = $region120
        $region119: #{_decode_core.1} parent=87 // pred_region
          %1414 = vsyncadd %s1401, 0
          %s1415 = smul.addr %s51, 2
          %s1416 = scalar_lea.hbm %s18, %s1415
          %s1418 = sshll.u32 %s1404, 4
          %s1419 = int_to_ptr.vmem [resolvable:$true] %s1418
          %s1420 = sshll.u32 %s1416, 4
          %s1421 = int_to_ptr.hbm [resolvable:$true] %s1420
          %1423 = dma.vmem_to_hbm [thread:$0]  %s1419, 32, %s1421, %s1401
        $region120: #{_decode_core.1} parent=87 // pred_fallthru
          _
        // Predicated region
        $region121: #{_decode_core.1} parent=87 // pred_check
          %p1424 = pneg %p457
        $region122: #{_decode_core.1} parent=87 // pred_check_branch
          %1426 = sbr.rel (%p1424) target = $region124
        $region123: #{_decode_core.1} parent=87 // pred_region
          %1428 = vsyncadd %s1406, 0
          %s1429 = smul.addr %s51, 2
          %s1430 = scalar_lea.hbm %s19, %s1429
          %s1432 = sshll.u32 %s1409, 4
          %s1433 = int_to_ptr.vmem [resolvable:$true] %s1432
          %s1434 = sshll.u32 %s1430, 4
          %s1435 = int_to_ptr.hbm [resolvable:$true] %s1434
          %1437 = dma.vmem_to_hbm [thread:$0]  %s1433, 32, %s1435, %s1406
        $region124: #{_decode_core.1} parent=87 // pred_fallthru
          _
      $region88: #{_decode_core.1} parent=5 // pred_fallthru
        _
      %p1438 = scmp.le.s32.totalorder 2, %s46
      // Predicated region
      $region125: #{_decode_core.1} parent=5 // pred_check
        %p1439 = pneg %p1438
      $region126: #{_decode_core.1} parent=5 // pred_check_branch
        %1441 = sbr.rel (%p1439) target = $region128
      $region127: #{_decode_core.1} parent=5 // pred_region
        %s1442 = ssub.s32 %s46, 2
        // Predicated region
        $region129: #{_decode_core.1} parent=127 // pred_check
          %p1443 = pneg %p437
        $region130: #{_decode_core.1} parent=127 // pred_check_branch
          %1445 = sbr.rel (%p1443) target = $region132
        $region131: #{_decode_core.1} parent=127 // pred_region
          %s1446 = sand.u32 %s422, 1
          %s1447 = scalar_lea.sflag [#allocation10], %s1446
          %s1448 = sand.u32 %s422, 1
          %s1449 = smul.addr %s1448, 2
          %s1450 = scalar_lea.vmem [#allocation19], %s1449
          %1452 = dma.done %s1447, 32
        $region132: #{_decode_core.1} parent=127 // pred_fallthru
          _
        // Predicated region
        $region133: #{_decode_core.1} parent=127 // pred_check
          %p1453 = pneg %p463
        $region134: #{_decode_core.1} parent=127 // pred_check_branch
          %1455 = sbr.rel (%p1453) target = $region136
        $region135: #{_decode_core.1} parent=127 // pred_region
          %s1456 = sand.u32 %s448, 1
          %s1457 = scalar_lea.sflag [#allocation21], %s1456
          %s1458 = sand.u32 %s448, 1
          %s1459 = smul.addr %s1458, 2
          %s1460 = scalar_lea.vmem [#allocation20], %s1459
          %1462 = dma.done %s1457, 32
        $region136: #{_decode_core.1} parent=127 // pred_fallthru
          _
      $region128: #{_decode_core.1} parent=5 // pred_fallthru
        _
    $region6: #{_decode_core.1} parent=1 // loop_footer
      %s50 = sadd.s32 1, %s46
    $region7: #{_decode_core.1} parent=1 // loop_footer_branch
      %45 = sbr.rel target = $region3
    $region8: #{_decode_core.1} parent=1 // loop_exit
      _
    %1463 = vsyncpa [#allocation9], 1
    %s1464 = scalar_lea.sflag [#allocation9], 1
    %1465 = vsyncpa %s1464, 1
    %1466 = vsyncpa [#allocation12], 1
    %1467 = vsyncpa [#allocation15], 1
    %1468 = vsyncpa [#allocation18], 1
    %1469 = vsyncpa [#allocation10], 1
    %s1470 = scalar_lea.sflag [#allocation10], 1
    %1471 = vsyncpa %s1470, 1
    %1472 = vsyncpa [#allocation21], 1
    %s1473 = scalar_lea.sflag [#allocation21], 1
    %1474 = vsyncpa %s1473, 1

</llo_original>
